<compile_context>
chip_gen: v6e
topology: v6e:2x2x1
jax: 0.10.0
libtpu: 0.0.40
codegen_flags: <defaults>
</compile_context>

<pallas_src>
import functools
import numpy as np
import jax
import jax.numpy as jnp
from jax.experimental import pallas as pl
from jax.experimental.pallas import tpu as pltpu

# ---------------- configuration (small but structurally faithful) ----------------
FILTER_LENGTH = 512                       # module default is 1024; scaled down
N_OVERLAP = 4
HOP = FILTER_LENGTH // N_OVERLAP          # 128 (lane aligned)
WIN_LENGTH = FILTER_LENGTH
CUTOFF = FILTER_LENGTH // 2 + 1           # 257 frequency bins
CP = 384                                  # CUTOFF zero-padded to a multiple of 128
NUM_SAMPLES = 1024
BATCH = 2

PAD = FILTER_LENGTH // 2
L_PAD = NUM_SAMPLES + 2 * PAD             # reflect-padded length (1536)
T_FRAMES = (L_PAD - FILTER_LENGTH) // HOP + 1          # 9
L_CONV = (T_FRAMES - 1) * HOP + FILTER_LENGTH          # conv_transpose1d output length (1536)
LANE = 128
ROWS = L_CONV // LANE                     # 12
assert L_PAD == L_CONV == ROWS * LANE
assert HOP == LANE and FILTER_LENGTH == N_OVERLAP * LANE and T_FRAMES + N_OVERLAP - 1 == ROWS
TINY = float(np.finfo(np.float32).tiny)


# ---------------- STFT parameter construction (deterministic, numpy) ----------------
def _hann_periodic(n):
    k = np.arange(n)
    return 0.5 - 0.5 * np.cos(2.0 * np.pi * k / n)


def build_stft_params():
    N = FILTER_LENGTH
    fourier_basis = np.fft.fft(np.eye(N))
    fb = np.vstack([np.real(fourier_basis[:CUTOFF]),
                    np.imag(fourier_basis[:CUTOFF])])            # (2C, N)
    scale = N / HOP
    inv = np.linalg.pinv(scale * fb).T                           # (2C, N)
    win = _hann_periodic(WIN_LENGTH)                             # periodic hann
    # (pad_center is a no-op: win_length == filter_length)
    fwd = (fb * win[None, :]).astype(np.float32)                 # windowed forward basis
    invb = (inv * win[None, :]).astype(np.float32)               # windowed inverse basis

    # zero-pad frequency bins CUTOFF -> CP (mathematically inert) and fuse real|imag
    fwd_re = np.zeros((CP, N), np.float32); fwd_re[:CUTOFF] = fwd[:CUTOFF]
    fwd_im = np.zeros((CP, N), np.float32); fwd_im[:CUTOFF] = fwd[CUTOFF:]
    inv_re = np.zeros((CP, N), np.float32); inv_re[:CUTOFF] = invb[:CUTOFF]
    inv_im = np.zeros((CP, N), np.float32); inv_im[:CUTOFF] = invb[CUTOFF:]
    fwd_cat = np.concatenate([fwd_re, fwd_im], axis=0).T         # (N, 2*CP)
    inv_cat = np.concatenate([inv_re, inv_im], axis=0)           # (2*CP, N)

    # window_sumsquare correction + filter_length/hop scaling (one elementwise vector)
    win_sq = win.astype(np.float64) ** 2
    wsum = np.zeros(L_CONV, dtype=np.float64)
    for i in range(T_FRAMES):
        s = i * HOP
        wsum[s:s + N] += win_sq[:min(N, L_CONV - s)]
    corr = np.where(wsum > TINY, scale / wsum, scale).astype(np.float32)

    fwd_cat_bf = jnp.asarray(fwd_cat, dtype=jnp.bfloat16)        # bf16 bases: 1 MXU pass, half DMA bytes
    inv_cat_bf = jnp.asarray(inv_cat, dtype=jnp.bfloat16)
    corr2d = jnp.asarray(corr.reshape(ROWS, LANE))               # lane-dense correction
    return fwd_cat_bf, inv_cat_bf, corr2d


# ---------------- Pallas kernel ----------------
def denoiser_kernel(audio_ref,   # (B*ROWS, LANE)  f32 reflect-padded audio, lane-dense
                    fwd_ref,     # (N, 2*CP)       bf16 fused [real | imag] forward basis
                    inv_ref,     # (2*CP, N)       bf16 fused [real ; imag] inverse basis
                    bias_ref,    # (1, CP)         f32 strength * bias spectrum (zero-padded)
                    corr_ref,    # (B*ROWS, LANE)  f32 window-sumsquare / hop-scale correction
                    out_ref,     # (B*ROWS, LANE)  f32 overlap-added output (untrimmed)
                    *, batch):
    # --- framing (the im2col of F.conv1d with stride=HOP) ---
    # frame t of batch b covers rows b*ROWS+t .. b*ROWS+t+3 of the (B*12,128) slab,
    # so frames = 4 sublane-shifted VMEM reads concatenated along lanes, per batch,
    # stacked along sublanes -> one (B*T, N) LHS for a single fused MXU pass.
    frames = jnp.concatenate(
        [jnp.concatenate(
            [audio_ref[b * ROWS + k: b * ROWS + k + T_FRAMES, :]
             for k in range(N_OVERLAP)], axis=1)
         for b in range(batch)], axis=0).astype(jnp.bfloat16)            # (B*T, N)

    # --- forward STFT: ONE fused bf16 MXU matmul (real | imag halves along lanes) ---
    spec = jnp.dot(frames, fwd_ref[...],
                   preferred_element_type=jnp.float32)                   # (B*T, 2*CP)
    re = spec[:, :CP]
    im = spec[:, CP:]

    # --- denoise: mag' = clamp(mag - strength*bias, 0), keep original phase ---
    # re' = re * s, im' = im * s with s = max(1 - (strength*bias)*rsqrt(|S|^2), 0).
    # bias >= 0, so the mag==0 case yields 0, matching torch's atan2(0,0)=0 path.
    power = re * re + im * im
    inv_mag = jax.lax.rsqrt(jnp.maximum(power, TINY))                    # EUP, no divides
    s = jnp.maximum(1.0 - bias_ref[...] * inv_mag, 0.0)                  # (B*T, CP)
    den = jnp.concatenate([re * s, im * s], axis=1).astype(jnp.bfloat16)  # (B*T, 2*CP)

    # --- inverse STFT frame synthesis: ONE fused bf16 MXU matmul ---
    fr = jnp.dot(den, inv_ref[...], preferred_element_type=jnp.float32)  # (B*T, N)

    # --- overlap-add fully in vregs (stride = HOP = LANE): lane chunk k of frame t
    #     contributes to output row t+k; build each (ROWS, LANE) slab as the sum of the
    #     four sublane-shifted chunks, then ONE fused lane-dense store. ---
    oa_parts = []
    for b in range(batch):
        fr_b = fr[b * T_FRAMES:(b + 1) * T_FRAMES, :]                    # (T, N)
        oa_b = None
        for k in range(N_OVERLAP):
            chunk = fr_b[:, k * LANE:(k + 1) * LANE]                     # (T, LANE)
            pieces = []
            if k > 0:
                pieces.append(jnp.zeros((k, LANE), jnp.float32))
            pieces.append(chunk)
            if N_OVERLAP - 1 - k > 0:
                pieces.append(jnp.zeros((N_OVERLAP - 1 - k, LANE), jnp.float32))
            shifted = pieces[0] if len(pieces) == 1 else jnp.concatenate(pieces, axis=0)
            oa_b = shifted if oa_b is None else oa_b + shifted           # (ROWS, LANE)
        oa_parts.append(oa_b)
    oa = oa_parts[0] if batch == 1 else jnp.concatenate(oa_parts, axis=0)  # (B*ROWS, LANE)

    # --- fused window-sumsquare normalization + scaling; one lane-dense store ---
    out_ref[...] = oa * corr_ref[...]


# ---------------- wrapper ----------------
def denoiser_forward(audio, bias_spec, fwd_cat_bf, inv_cat_bf, corr2d, strength=0.1):
    B = audio.shape[0]
    # reflect pad (matches F.pad(..., mode='reflect')), reshape to one lane-dense slab
    audio_pad = jnp.pad(audio, ((0, 0), (PAD, PAD)), mode='reflect')
    audio2d = audio_pad.reshape(B * ROWS, LANE)
    # strength folded into the bias spectrum (saves a per-call broadcast multiply)
    bias2d = jnp.zeros((1, CP), jnp.float32).at[0, :CUTOFF].set(
        bias_spec[0, :, 0] * jnp.float32(strength))
    corr_full = jnp.tile(corr2d, (B, 1))                                  # (B*ROWS, LANE)

    kernel = functools.partial(denoiser_kernel, batch=B)
    vmem_spec = pl.BlockSpec(memory_space=pltpu.MemorySpace.VMEM)
    # No grid: batch is merged into the matmul M dimension, the whole problem (< 2 MiB)
    # lives in VMEM, constants are fetched exactly once and never double-buffered.
    out = pl.pallas_call(
        kernel,
        out_shape=jax.ShapeDtypeStruct((B * ROWS, LANE), jnp.float32),
        in_specs=[vmem_spec] * 5,
        out_specs=vmem_spec,
    )(audio2d, fwd_cat_bf, inv_cat_bf, bias2d, corr_full)

    # trim filter_length/2 from both ends, add channel dim -> (B, 1, num_samples)
    out = out.reshape(B, L_CONV)[:, PAD:L_CONV - PAD]
    return out[:, None, :]


# ---------------- pure-numpy reference (mirrors PyTorch semantics) ----------------
# Uses the same bf16-rounded bases / activations fed to the MXU so the comparison only
# measures accumulation-order differences.
def reference_forward(audio, bias_spec, fwd_cat_bf, inv_cat_bf, corr2d, strength=0.1):
    def bf16_round(x):
        return np.asarray(jnp.asarray(x, dtype=jnp.bfloat16).astype(jnp.float32))

    audio_pad = np.pad(np.asarray(audio), ((0, 0), (PAD, PAD)), mode='reflect')
    frames = np.stack([audio_pad[:, t * HOP:t * HOP + FILTER_LENGTH]
                       for t in range(T_FRAMES)], axis=1)               # (B, T, N)
    frames = bf16_round(frames).astype(np.float64)
    fwd = np.asarray(fwd_cat_bf.astype(jnp.float32)).astype(np.float64)  # (N, 2*CP)
    inv = np.asarray(inv_cat_bf.astype(jnp.float32)).astype(np.float64)  # (2*CP, N)

    spec = frames @ fwd                                                  # (B, T, 2*CP)
    re, im = spec[..., :CP], spec[..., CP:]
    mag = np.sqrt(re ** 2 + im ** 2)
    phase = np.arctan2(im, re)
    bias = np.zeros((CP,), np.float64)
    bias[:CUTOFF] = np.asarray(bias_spec)[0, :, 0]
    den = np.maximum(mag - bias[None, None, :] * strength, 0.0)          # torch.clamp(., 0)
    den_cat = np.concatenate([den * np.cos(phase), den * np.sin(phase)], axis=-1)
    den_cat = bf16_round(den_cat).astype(np.float64)
    fr = den_cat @ inv                                                   # (B, T, N)
    out = np.zeros((audio.shape[0], L_CONV), dtype=np.float64)
    for t in range(T_FRAMES):
        out[:, t * HOP:t * HOP + FILTER_LENGTH] += fr[:, t, :]
    out = out * np.asarray(corr2d).reshape(-1)[None, :]
    out = out[:, PAD:L_CONV - PAD]
    return out[:, None, :].astype(np.float32)


if __name__ == "__main__":
    key = jax.random.PRNGKey(0)
    k1, k2 = jax.random.split(key)
    audio = jax.random.normal(k1, (BATCH, NUM_SAMPLES), dtype=jnp.float32)
    # deterministic synthetic bias_spec (shape matches registered buffer (1, C, 1), nonnegative)
    bias_spec = jnp.abs(jax.random.normal(k2, (1, CUTOFF, 1), dtype=jnp.float32)) * 0.5

    fwd_cat_bf, inv_cat_bf, corr2d = build_stft_params()

    out = denoiser_forward(audio, bias_spec, fwd_cat_bf, inv_cat_bf, corr2d, strength=0.1)
    out = jax.block_until_ready(out)

    assert out.shape == (BATCH, 1, NUM_SAMPLES), out.shape
    out_np = np.asarray(out)
    assert np.isfinite(out_np).all()

    ref = reference_forward(audio, bias_spec, fwd_cat_bf, inv_cat_bf, corr2d, strength=0.1)
    err = float(np.max(np.abs(out_np - ref)))
    assert err < 1e-2, f"max abs error {err}"

    print("KERNEL_OK")
</pallas_src>

<mosaic_0001>
module attributes {stable_mosaic.version = 11 : i64} {
  func.func @denoiser_kernel(%arg0: memref<24x128xf32, #tpu.memory_space<vmem>>, %arg1: memref<512x768xbf16, #tpu.memory_space<vmem>>, %arg2: memref<768x512xbf16, #tpu.memory_space<vmem>>, %arg3: memref<1x384xf32, #tpu.memory_space<vmem>>, %arg4: memref<24x128xf32, #tpu.memory_space<vmem>>, %arg5: memref<24x128xf32, #tpu.memory_space<vmem>>) attributes {dimension_semantics = [], scalar_prefetch = 0 : i64, scratch_operands = 0 : i64, tpu.core_type = #tpu.core_type<tc>} {
    %c0 = arith.constant 0 : index
    %c0_0 = arith.constant 0 : index
    %0 = vector.load %arg0[%c0, %c0_0] : memref<24x128xf32, #tpu.memory_space<vmem>>, vector<9x128xf32>
    %c1 = arith.constant 1 : index
    %c0_1 = arith.constant 0 : index
    %1 = vector.load %arg0[%c1, %c0_1] : memref<24x128xf32, #tpu.memory_space<vmem>>, vector<9x128xf32>
    %c2 = arith.constant 2 : index
    %c0_2 = arith.constant 0 : index
    %2 = vector.load %arg0[%c2, %c0_2] : memref<24x128xf32, #tpu.memory_space<vmem>>, vector<9x128xf32>
    %c3 = arith.constant 3 : index
    %c0_3 = arith.constant 0 : index
    %3 = vector.load %arg0[%c3, %c0_3] : memref<24x128xf32, #tpu.memory_space<vmem>>, vector<9x128xf32>
    %4 = tpu.concatenate %0, %1, %2, %3 in 1 : vector<9x128xf32>, vector<9x128xf32>, vector<9x128xf32>, vector<9x128xf32> -> vector<9x512xf32>
    %c12 = arith.constant 12 : index
    %c0_4 = arith.constant 0 : index
    %5 = vector.load %arg0[%c12, %c0_4] : memref<24x128xf32, #tpu.memory_space<vmem>>, vector<9x128xf32>
    %c13 = arith.constant 13 : index
    %c0_5 = arith.constant 0 : index
    %6 = vector.load %arg0[%c13, %c0_5] : memref<24x128xf32, #tpu.memory_space<vmem>>, vector<9x128xf32>
    %c14 = arith.constant 14 : index
    %c0_6 = arith.constant 0 : index
    %7 = vector.load %arg0[%c14, %c0_6] : memref<24x128xf32, #tpu.memory_space<vmem>>, vector<9x128xf32>
    %c15 = arith.constant 15 : index
    %c0_7 = arith.constant 0 : index
    %8 = vector.load %arg0[%c15, %c0_7] : memref<24x128xf32, #tpu.memory_space<vmem>>, vector<9x128xf32>
    %9 = tpu.concatenate %5, %6, %7, %8 in 1 : vector<9x128xf32>, vector<9x128xf32>, vector<9x128xf32>, vector<9x128xf32> -> vector<9x512xf32>
    %10 = tpu.concatenate %4, %9 in 0 : vector<9x512xf32>, vector<9x512xf32> -> vector<18x512xf32>
    %11 = arith.truncf %10 : vector<18x512xf32> to vector<18x512xbf16>
    %c0_8 = arith.constant 0 : index
    %c0_9 = arith.constant 0 : index
    %12 = vector.load %arg1[%c0_8, %c0_9] : memref<512x768xbf16, #tpu.memory_space<vmem>>, vector<512x768xbf16>
    %cst = arith.constant dense<0.000000e+00> : vector<18x768xf32>
    %13 = tpu.matmul %11, %12, %cst {dimension_numbers = #tpu.dot_dimension_numbers<[1], [0], [0], [1], [0, 0, 1, 1], [], []>} : vector<18x512xbf16>, vector<512x768xbf16>, vector<18x768xf32> -> vector<18x768xf32>
    %14 = vector.extract_strided_slice %13 {offsets = [0, 0], sizes = [18, 384], strides = [1, 1]} : vector<18x768xf32> to vector<18x384xf32>
    %15 = vector.extract_strided_slice %13 {offsets = [0, 384], sizes = [18, 384], strides = [1, 1]} : vector<18x768xf32> to vector<18x384xf32>
    %16 = arith.mulf %14, %14 : vector<18x384xf32>
    %17 = arith.mulf %15, %15 : vector<18x384xf32>
    %18 = arith.addf %16, %17 : vector<18x384xf32>
    %cst_10 = arith.constant 1.17549435E-38 : f32
    %19 = vector.broadcast %cst_10 : f32 to vector<18x384xf32>
    %20 = arith.maximumf %18, %19 : vector<18x384xf32>
    %21 = math.rsqrt %20 : vector<18x384xf32>
    %c0_11 = arith.constant 0 : index
    %c0_12 = arith.constant 0 : index
    %22 = vector.load %arg3[%c0_11, %c0_12] : memref<1x384xf32, #tpu.memory_space<vmem>>, vector<1x384xf32>
    %23 = vector.broadcast %22 : vector<1x384xf32> to vector<18x384xf32>
    %24 = arith.mulf %23, %21 : vector<18x384xf32>
    %cst_13 = arith.constant 1.000000e+00 : f32
    %25 = vector.broadcast %cst_13 : f32 to vector<18x384xf32>
    %26 = arith.subf %25, %24 : vector<18x384xf32>
    %cst_14 = arith.constant 0.000000e+00 : f32
    %27 = vector.broadcast %cst_14 : f32 to vector<18x384xf32>
    %28 = arith.maximumf %26, %27 : vector<18x384xf32>
    %29 = arith.mulf %14, %28 : vector<18x384xf32>
    %30 = arith.mulf %15, %28 : vector<18x384xf32>
    %31 = tpu.concatenate %29, %30 in 1 : vector<18x384xf32>, vector<18x384xf32> -> vector<18x768xf32>
    %32 = arith.truncf %31 : vector<18x768xf32> to vector<18x768xbf16>
    %c0_15 = arith.constant 0 : index
    %c0_16 = arith.constant 0 : index
    %33 = vector.load %arg2[%c0_15, %c0_16] : memref<768x512xbf16, #tpu.memory_space<vmem>>, vector<768x512xbf16>
    %cst_17 = arith.constant dense<0.000000e+00> : vector<18x512xf32>
    %34 = tpu.matmul %32, %33, %cst_17 {dimension_numbers = #tpu.dot_dimension_numbers<[1], [0], [0], [1], [0, 0, 1, 1], [], []>} : vector<18x768xbf16>, vector<768x512xbf16>, vector<18x512xf32> -> vector<18x512xf32>
    %35 = vector.extract_strided_slice %34 {offsets = [0, 0], sizes = [9, 512], strides = [1, 1]} : vector<18x512xf32> to vector<9x512xf32>
    %36 = vector.extract_strided_slice %35 {offsets = [0, 0], sizes = [9, 128], strides = [1, 1]} : vector<9x512xf32> to vector<9x128xf32>
    %cst_18 = arith.constant 0.000000e+00 : f32
    %37 = vector.broadcast %cst_18 : f32 to vector<3x128xf32>
    %38 = tpu.concatenate %36, %37 in 0 : vector<9x128xf32>, vector<3x128xf32> -> vector<12x128xf32>
    %39 = vector.extract_strided_slice %35 {offsets = [0, 128], sizes = [9, 128], strides = [1, 1]} : vector<9x512xf32> to vector<9x128xf32>
    %cst_19 = arith.constant 0.000000e+00 : f32
    %40 = vector.broadcast %cst_19 : f32 to vector<1x128xf32>
    %cst_20 = arith.constant 0.000000e+00 : f32
    %41 = vector.broadcast %cst_20 : f32 to vector<2x128xf32>
    %42 = tpu.concatenate %40, %39, %41 in 0 : vector<1x128xf32>, vector<9x128xf32>, vector<2x128xf32> -> vector<12x128xf32>
    %43 = arith.addf %38, %42 : vector<12x128xf32>
    %44 = vector.extract_strided_slice %35 {offsets = [0, 256], sizes = [9, 128], strides = [1, 1]} : vector<9x512xf32> to vector<9x128xf32>
    %cst_21 = arith.constant 0.000000e+00 : f32
    %45 = vector.broadcast %cst_21 : f32 to vector<2x128xf32>
    %cst_22 = arith.constant 0.000000e+00 : f32
    %46 = vector.broadcast %cst_22 : f32 to vector<1x128xf32>
    %47 = tpu.concatenate %45, %44, %46 in 0 : vector<2x128xf32>, vector<9x128xf32>, vector<1x128xf32> -> vector<12x128xf32>
    %48 = arith.addf %43, %47 : vector<12x128xf32>
    %49 = vector.extract_strided_slice %35 {offsets = [0, 384], sizes = [9, 128], strides = [1, 1]} : vector<9x512xf32> to vector<9x128xf32>
    %cst_23 = arith.constant 0.000000e+00 : f32
    %50 = vector.broadcast %cst_23 : f32 to vector<3x128xf32>
    %51 = tpu.concatenate %50, %49 in 0 : vector<3x128xf32>, vector<9x128xf32> -> vector<12x128xf32>
    %52 = arith.addf %48, %51 : vector<12x128xf32>
    %53 = vector.extract_strided_slice %34 {offsets = [9, 0], sizes = [9, 512], strides = [1, 1]} : vector<18x512xf32> to vector<9x512xf32>
    %54 = vector.extract_strided_slice %53 {offsets = [0, 0], sizes = [9, 128], strides = [1, 1]} : vector<9x512xf32> to vector<9x128xf32>
    %cst_24 = arith.constant 0.000000e+00 : f32
    %55 = vector.broadcast %cst_24 : f32 to vector<3x128xf32>
    %56 = tpu.concatenate %54, %55 in 0 : vector<9x128xf32>, vector<3x128xf32> -> vector<12x128xf32>
    %57 = vector.extract_strided_slice %53 {offsets = [0, 128], sizes = [9, 128], strides = [1, 1]} : vector<9x512xf32> to vector<9x128xf32>
    %cst_25 = arith.constant 0.000000e+00 : f32
    %58 = vector.broadcast %cst_25 : f32 to vector<1x128xf32>
    %cst_26 = arith.constant 0.000000e+00 : f32
    %59 = vector.broadcast %cst_26 : f32 to vector<2x128xf32>
    %60 = tpu.concatenate %58, %57, %59 in 0 : vector<1x128xf32>, vector<9x128xf32>, vector<2x128xf32> -> vector<12x128xf32>
    %61 = arith.addf %56, %60 : vector<12x128xf32>
    %62 = vector.extract_strided_slice %53 {offsets = [0, 256], sizes = [9, 128], strides = [1, 1]} : vector<9x512xf32> to vector<9x128xf32>
    %cst_27 = arith.constant 0.000000e+00 : f32
    %63 = vector.broadcast %cst_27 : f32 to vector<2x128xf32>
    %cst_28 = arith.constant 0.000000e+00 : f32
    %64 = vector.broadcast %cst_28 : f32 to vector<1x128xf32>
    %65 = tpu.concatenate %63, %62, %64 in 0 : vector<2x128xf32>, vector<9x128xf32>, vector<1x128xf32> -> vector<12x128xf32>
    %66 = arith.addf %61, %65 : vector<12x128xf32>
    %67 = vector.extract_strided_slice %53 {offsets = [0, 384], sizes = [9, 128], strides = [1, 1]} : vector<9x512xf32> to vector<9x128xf32>
    %cst_29 = arith.constant 0.000000e+00 : f32
    %68 = vector.broadcast %cst_29 : f32 to vector<3x128xf32>
    %69 = tpu.concatenate %68, %67 in 0 : vector<3x128xf32>, vector<9x128xf32> -> vector<12x128xf32>
    %70 = arith.addf %66, %69 : vector<12x128xf32>
    %71 = tpu.concatenate %52, %70 in 0 : vector<12x128xf32>, vector<12x128xf32> -> vector<24x128xf32>
    %c0_30 = arith.constant 0 : index
    %c0_31 = arith.constant 0 : index
    %72 = vector.load %arg4[%c0_30, %c0_31] : memref<24x128xf32, #tpu.memory_space<vmem>>, vector<24x128xf32>
    %73 = arith.mulf %71, %72 : vector<24x128xf32>
    %c0_32 = arith.constant 0 : index
    %c0_33 = arith.constant 0 : index
    %74 = vector.load %arg5[%c0_32, %c0_33] : memref<24x128xf32, #tpu.memory_space<vmem>>, vector<24x128xf32>
    tpu.vector_store %arg5[%c0_32, %c0_33], %73 {strides = array<i32>} : memref<24x128xf32, #tpu.memory_space<vmem>>, vector<24x128xf32>,
    return
  }
}

</mosaic_0001>

<llo_original>
// kernel: tpu_custom_call.1
$region0: #{tpu_custom_call.1}
  #allocation0 [shape = 'u32[]', space=smem, size = 0x4, offset = 0x4, fixed_abs, tag = 'smem constant byte address 0x4 - core index']
  #allocation1 [shape = 'u32[144,128]{1,0:T(1,128)}', space=vmem, size = 0x12000, scoped, tag = 'internal scratch']
  %s0 = inlined_call_operand.hbm [shape: f32[24,128], index: 0, kind: input, shape index: {}]
  %s1 = inlined_call_operand.hbm [shape: bf16[512,768], index: 1, kind: input, shape index: {}]
  %s2 = inlined_call_operand.hbm [shape: bf16[768,512], index: 2, kind: input, shape index: {}]
  %s3 = inlined_call_operand.vmem [shape: f32[1,384], index: 3, kind: input, shape index: {}]
  %s4 = inlined_call_operand.hbm [shape: f32[24,128], index: 4, kind: input, shape index: {}]
  %s5 = inlined_call_operand.hbm [shape: f32[24,128], index: 5, kind: output, shape index: {}]
  %s6 = sld [smem:[#allocation0]]
  $region46: #{tpu_custom_call.1} parent=0
    _
  %s8 = ssub.s32 1, %s6
  %s9 = scalar_select 0, %s8, %s6
  $region1: #{tpu_custom_call.1} parent=0
    #allocation2 [shape = 'u8[12288]{0}', space=vmem, size = 0x3000, scoped, tag = 'input window, operand 0, single buffered']
    #allocation3 [shape = 's32[1]{0}', space=sflag, size = 0x4, scoped, tag = 'scoped memory for tpu_custom_call.1']
    #allocation4 [shape = 's32[1]{0}', space=sflag, size = 0x4, scoped, tag = 'scoped memory for tpu_custom_call.1']
    #allocation5 [shape = 'u8[786432]{0}', space=vmem, size = 0xc0000, scoped, tag = 'input window, operand 1, single buffered']
    #allocation6 [shape = 's32[1]{0}', space=sflag, size = 0x4, scoped, tag = 'scoped memory for tpu_custom_call.1']
    #allocation7 [shape = 'u8[786432]{0}', space=vmem, size = 0xc0000, scoped, tag = 'input window, operand 2, single buffered']
    #allocation8 [shape = 'u8[12288]{0}', space=vmem, size = 0x3000, scoped, tag = 'input window, operand 4, single buffered']
    #allocation9 [shape = 's32[1]{0}', space=sflag, size = 0x4, scoped, tag = 'scoped memory for tpu_custom_call.1']
    #allocation10 [shape = 'u8[12288]{0}', space=vmem, size = 0x3000, scoped, tag = 'output window, operand 0, single buffered']
    %10 = vsyncpa [#allocation3], 0
    %11 = vsyncpa [#allocation6], 0
    %12 = vsyncpa [#allocation9], 0
    %13 = vsyncpa [#allocation4], 0
    // Predicated region
    $region2: #{tpu_custom_call.1} parent=1 // pred_check
      _
    $region3: #{tpu_custom_call.1} parent=1 // pred_check_branch
      %15 = sbr.rel (0) target = $region5
    $region4: #{tpu_custom_call.1} parent=1 // pred_region
      %s17 = ssub.s32 384, 384
      %18 = vsyncadd [#allocation3], %s17
      %s19 = sshll.u32 [#allocation2], 4
      %s20 = int_to_ptr.vmem [resolvable:$true] %s19
      %25 = dma.hbm_to_vmem [thread:$0]  %s0, 384, %s20, [#allocation3], 128, 128, 8
    $region5: #{tpu_custom_call.1} parent=1 // pred_fallthru
      _
    // Predicated region
    $region6: #{tpu_custom_call.1} parent=1 // pred_check
      _
    $region7: #{tpu_custom_call.1} parent=1 // pred_check_branch
      %27 = sbr.rel (0) target = $region9
    $region8: #{tpu_custom_call.1} parent=1 // pred_region
      %s29 = ssub.s32 24576, 24576
      %30 = vsyncadd [#allocation6], %s29
      %s31 = sshll.u32 [#allocation5], 4
      %s32 = int_to_ptr.vmem [resolvable:$true] %s31
      %37 = dma.hbm_to_vmem [thread:$0]  %s1, 24576, %s32, [#allocation6], 384, 384, 24
    $region9: #{tpu_custom_call.1} parent=1 // pred_fallthru
      _
    // Predicated region
    $region10: #{tpu_custom_call.1} parent=1 // pred_check
      _
    $region11: #{tpu_custom_call.1} parent=1 // pred_check_branch
      %39 = sbr.rel (0) target = $region13
    $region12: #{tpu_custom_call.1} parent=1 // pred_region
      %s41 = ssub.s32 24576, 24576
      %42 = vsyncadd [#allocation6], %s41
      %s43 = sshll.u32 [#allocation7], 4
      %s44 = int_to_ptr.vmem [resolvable:$true] %s43
      %49 = dma.hbm_to_vmem [thread:$0]  %s2, 24576, %s44, [#allocation6], 256, 256, 16
    $region13: #{tpu_custom_call.1} parent=1 // pred_fallthru
      _
    // Predicated region
    $region14: #{tpu_custom_call.1} parent=1 // pred_check
      _
    $region15: #{tpu_custom_call.1} parent=1 // pred_check_branch
      %51 = sbr.rel (0) target = $region17
    $region16: #{tpu_custom_call.1} parent=1 // pred_region
      _
    $region17: #{tpu_custom_call.1} parent=1 // pred_fallthru
      _
    // Predicated region
    $region18: #{tpu_custom_call.1} parent=1 // pred_check
      _
    $region19: #{tpu_custom_call.1} parent=1 // pred_check_branch
      %53 = sbr.rel (0) target = $region21
    $region20: #{tpu_custom_call.1} parent=1 // pred_region
      %s55 = ssub.s32 384, 384
      %56 = vsyncadd [#allocation9], %s55
      %s57 = sshll.u32 [#allocation8], 4
      %s58 = int_to_ptr.vmem [resolvable:$true] %s57
      %63 = dma.hbm_to_vmem [thread:$0]  %s4, 384, %s58, [#allocation9], 128, 128, 8
    $region21: #{tpu_custom_call.1} parent=1 // pred_fallthru
      _
    // Predicated region
    $region22: #{tpu_custom_call.1} parent=1 // pred_check
      _
    $region23: #{tpu_custom_call.1} parent=1 // pred_check_branch
      %65 = sbr.rel (0) target = $region25
    $region24: #{tpu_custom_call.1} parent=1 // pred_region
      %66 = dma.done [#allocation3], 384
    $region25: #{tpu_custom_call.1} parent=1 // pred_fallthru
      _
    // Predicated region
    $region26: #{tpu_custom_call.1} parent=1 // pred_check
      _
    $region27: #{tpu_custom_call.1} parent=1 // pred_check_branch
      %68 = sbr.rel (0) target = $region29
    $region28: #{tpu_custom_call.1} parent=1 // pred_region
      %69 = dma.done [#allocation6], 24576
    $region29: #{tpu_custom_call.1} parent=1 // pred_fallthru
      _
    // Predicated region
    $region30: #{tpu_custom_call.1} parent=1 // pred_check
      _
    $region31: #{tpu_custom_call.1} parent=1 // pred_check_branch
      %71 = sbr.rel (0) target = $region33
    $region32: #{tpu_custom_call.1} parent=1 // pred_region
      %72 = dma.done [#allocation6], 24576
    $region33: #{tpu_custom_call.1} parent=1 // pred_fallthru
      _
    // Predicated region
    $region34: #{tpu_custom_call.1} parent=1 // pred_check
      _
    $region35: #{tpu_custom_call.1} parent=1 // pred_check_branch
      %74 = sbr.rel (0) target = $region37
    $region36: #{tpu_custom_call.1} parent=1 // pred_region
      %75 = dma.done [#allocation9], 384
    $region37: #{tpu_custom_call.1} parent=1 // pred_fallthru
      _
    %v76 = vld [vmem:[#allocation2] sm:$0xff]
    %v77 = vld [vmem:[#allocation2 + $0x8] sm:$0x1]
    %v78 = vld [vmem:[#allocation2 + $0x1] sm:$0xff]
    %v79 = vld [vmem:[#allocation2 + $0x9] sm:$0x1]
    %v80 = vld [vmem:[#allocation2 + $0x2] sm:$0xff]
    %v81 = vld [vmem:[#allocation2 + $0xa] sm:$0x1]
    %v82 = vld [vmem:[#allocation2 + $0x3] sm:$0xff]
    %v83 = vld [vmem:[#allocation2 + $0xb] sm:$0x1]
    %v84 = vld [vmem:[#allocation2 + $0xc] sm:$0xff]
    %v85 = vld [vmem:[#allocation2 + $0x14] sm:$0x1]
    %v86 = vld [vmem:[#allocation2 + $0xd] sm:$0xff]
    %v87 = vld [vmem:[#allocation2 + $0x15] sm:$0x1]
    %v88 = vld [vmem:[#allocation2 + $0xe] sm:$0xff]
    %v89 = vld [vmem:[#allocation2 + $0x16] sm:$0x1]
    %v90 = vld [vmem:[#allocation2 + $0xf] sm:$0xff]
    %v91 = vld [vmem:[#allocation2 + $0x17] sm:$0x1]
    %vm100 = vcmask 1040384
    %v101 = vrot.slane %v84, 7
    %v102 = vrot.slane %v86, 7
    %v103 = vrot.slane %v88, 7
    %v104 = vrot.slane %v90, 7
    %v105 = vrot.slane %v85, 7
    %v106 = vsel %vm100, %v101, %v105
    %v107 = vrot.slane %v87, 7
    %v108 = vsel %vm100, %v102, %v107
    %v109 = vrot.slane %v89, 7
    %v110 = vsel %vm100, %v103, %v109
    %v111 = vrot.slane %v91, 7
    %v112 = vsel %vm100, %v104, %v111
    %v121 = vsel %vm100, %v77, %v101
    %v122 = vsel %vm100, %v79, %v102
    %v123 = vsel %vm100, %v81, %v103
    %v124 = vsel %vm100, %v83, %v104
    %v125 = vpack.c.bf16 %v121, %v76
    %v126 = vpack.c.bf16 %v122, %v78
    %v127 = vpack.c.bf16 %v123, %v80
    %v128 = vpack.c.bf16 %v124, %v82
    %v129 = vpack.c.bf16 %v106, %v106
    %v130 = vpack.c.bf16 %v108, %v108
    %v131 = vpack.c.bf16 %v110, %v110
    %v132 = vpack.c.bf16 %v112, %v112
    %v133 = vld [vmem:[#allocation5] sm:$0xff]
    %v134 = vld [vmem:[#allocation5 + $0x8] sm:$0xff]
    %v135 = vld [vmem:[#allocation5 + $0x10] sm:$0xff]
    %v136 = vld [vmem:[#allocation5 + $0x18] sm:$0xff]
    %v137 = vld [vmem:[#allocation5 + $0x20] sm:$0xff]
    %v138 = vld [vmem:[#allocation5 + $0x28] sm:$0xff]
    %v139 = vld [vmem:[#allocation5 + $0x30] sm:$0xff]
    %v140 = vld [vmem:[#allocation5 + $0x38] sm:$0xff]
    %v141 = vld [vmem:[#allocation5 + $0x40] sm:$0xff]
    %v142 = vld [vmem:[#allocation5 + $0x48] sm:$0xff]
    %v143 = vld [vmem:[#allocation5 + $0x50] sm:$0xff]
    %v144 = vld [vmem:[#allocation5 + $0x58] sm:$0xff]
    %v145 = vld [vmem:[#allocation5 + $0x60] sm:$0xff]
    %v146 = vld [vmem:[#allocation5 + $0x68] sm:$0xff]
    %v147 = vld [vmem:[#allocation5 + $0x70] sm:$0xff]
    %v148 = vld [vmem:[#allocation5 + $0x78] sm:$0xff]
    %v149 = vld [vmem:[#allocation5 + $0x80] sm:$0xff]
    %v150 = vld [vmem:[#allocation5 + $0x88] sm:$0xff]
    %v151 = vld [vmem:[#allocation5 + $0x90] sm:$0xff]
    %v152 = vld [vmem:[#allocation5 + $0x98] sm:$0xff]
    %v153 = vld [vmem:[#allocation5 + $0xa0] sm:$0xff]
    %v154 = vld [vmem:[#allocation5 + $0xa8] sm:$0xff]
    %v155 = vld [vmem:[#allocation5 + $0xb0] sm:$0xff]
    %v156 = vld [vmem:[#allocation5 + $0xb8] sm:$0xff]
    %v157 = vld [vmem:[#allocation5 + $0xc0] sm:$0xff]
    %v158 = vld [vmem:[#allocation5 + $0xc8] sm:$0xff]
    %v159 = vld [vmem:[#allocation5 + $0xd0] sm:$0xff]
    %v160 = vld [vmem:[#allocation5 + $0xd8] sm:$0xff]
    %v161 = vld [vmem:[#allocation5 + $0xe0] sm:$0xff]
    %v162 = vld [vmem:[#allocation5 + $0xe8] sm:$0xff]
    %v163 = vld [vmem:[#allocation5 + $0xf0] sm:$0xff]
    %v164 = vld [vmem:[#allocation5 + $0xf8] sm:$0xff]
    %v165 = vld [vmem:[#allocation5 + $0x100] sm:$0xff]
    %v166 = vld [vmem:[#allocation5 + $0x108] sm:$0xff]
    %v167 = vld [vmem:[#allocation5 + $0x110] sm:$0xff]
    %v168 = vld [vmem:[#allocation5 + $0x118] sm:$0xff]
    %v169 = vld [vmem:[#allocation5 + $0x120] sm:$0xff]
    %v170 = vld [vmem:[#allocation5 + $0x128] sm:$0xff]
    %v171 = vld [vmem:[#allocation5 + $0x130] sm:$0xff]
    %v172 = vld [vmem:[#allocation5 + $0x138] sm:$0xff]
    %v173 = vld [vmem:[#allocation5 + $0x140] sm:$0xff]
    %v174 = vld [vmem:[#allocation5 + $0x148] sm:$0xff]
    %v175 = vld [vmem:[#allocation5 + $0x150] sm:$0xff]
    %v176 = vld [vmem:[#allocation5 + $0x158] sm:$0xff]
    %v177 = vld [vmem:[#allocation5 + $0x160] sm:$0xff]
    %v178 = vld [vmem:[#allocation5 + $0x168] sm:$0xff]
    %v179 = vld [vmem:[#allocation5 + $0x170] sm:$0xff]
    %v180 = vld [vmem:[#allocation5 + $0x178] sm:$0xff]
    %v181 = vld [vmem:[#allocation5 + $0x180] sm:$0xff]
    %v182 = vld [vmem:[#allocation5 + $0x188] sm:$0xff]
    %v183 = vld [vmem:[#allocation5 + $0x190] sm:$0xff]
    %v184 = vld [vmem:[#allocation5 + $0x198] sm:$0xff]
    %v185 = vld [vmem:[#allocation5 + $0x1a0] sm:$0xff]
    %v186 = vld [vmem:[#allocation5 + $0x1a8] sm:$0xff]
    %v187 = vld [vmem:[#allocation5 + $0x1b0] sm:$0xff]
    %v188 = vld [vmem:[#allocation5 + $0x1b8] sm:$0xff]
    %v189 = vld [vmem:[#allocation5 + $0x1c0] sm:$0xff]
    %v190 = vld [vmem:[#allocation5 + $0x1c8] sm:$0xff]
    %v191 = vld [vmem:[#allocation5 + $0x1d0] sm:$0xff]
    %v192 = vld [vmem:[#allocation5 + $0x1d8] sm:$0xff]
    %v193 = vld [vmem:[#allocation5 + $0x1e0] sm:$0xff]
    %v194 = vld [vmem:[#allocation5 + $0x1e8] sm:$0xff]
    %v195 = vld [vmem:[#allocation5 + $0x1f0] sm:$0xff]
    %v196 = vld [vmem:[#allocation5 + $0x1f8] sm:$0xff]
    %v197 = vld [vmem:[#allocation5 + $0x200] sm:$0xff]
    %v198 = vld [vmem:[#allocation5 + $0x208] sm:$0xff]
    %v199 = vld [vmem:[#allocation5 + $0x210] sm:$0xff]
    %v200 = vld [vmem:[#allocation5 + $0x218] sm:$0xff]
    %v201 = vld [vmem:[#allocation5 + $0x220] sm:$0xff]
    %v202 = vld [vmem:[#allocation5 + $0x228] sm:$0xff]
    %v203 = vld [vmem:[#allocation5 + $0x230] sm:$0xff]
    %v204 = vld [vmem:[#allocation5 + $0x238] sm:$0xff]
    %v205 = vld [vmem:[#allocation5 + $0x240] sm:$0xff]
    %v206 = vld [vmem:[#allocation5 + $0x248] sm:$0xff]
    %v207 = vld [vmem:[#allocation5 + $0x250] sm:$0xff]
    %v208 = vld [vmem:[#allocation5 + $0x258] sm:$0xff]
    %v209 = vld [vmem:[#allocation5 + $0x260] sm:$0xff]
    %v210 = vld [vmem:[#allocation5 + $0x268] sm:$0xff]
    %v211 = vld [vmem:[#allocation5 + $0x270] sm:$0xff]
    %v212 = vld [vmem:[#allocation5 + $0x278] sm:$0xff]
    %v213 = vld [vmem:[#allocation5 + $0x280] sm:$0xff]
    %v214 = vld [vmem:[#allocation5 + $0x288] sm:$0xff]
    %v215 = vld [vmem:[#allocation5 + $0x290] sm:$0xff]
    %v216 = vld [vmem:[#allocation5 + $0x298] sm:$0xff]
    %v217 = vld [vmem:[#allocation5 + $0x2a0] sm:$0xff]
    %v218 = vld [vmem:[#allocation5 + $0x2a8] sm:$0xff]
    %v219 = vld [vmem:[#allocation5 + $0x2b0] sm:$0xff]
    %v220 = vld [vmem:[#allocation5 + $0x2b8] sm:$0xff]
    %v221 = vld [vmem:[#allocation5 + $0x2c0] sm:$0xff]
    %v222 = vld [vmem:[#allocation5 + $0x2c8] sm:$0xff]
    %v223 = vld [vmem:[#allocation5 + $0x2d0] sm:$0xff]
    %v224 = vld [vmem:[#allocation5 + $0x2d8] sm:$0xff]
    %v225 = vld [vmem:[#allocation5 + $0x2e0] sm:$0xff]
    %v226 = vld [vmem:[#allocation5 + $0x2e8] sm:$0xff]
    %v227 = vld [vmem:[#allocation5 + $0x2f0] sm:$0xff]
    %v228 = vld [vmem:[#allocation5 + $0x2f8] sm:$0xff]
    %v229 = vld [vmem:[#allocation5 + $0x300] sm:$0xff]
    %v230 = vld [vmem:[#allocation5 + $0x308] sm:$0xff]
    %v231 = vld [vmem:[#allocation5 + $0x310] sm:$0xff]
    %v232 = vld [vmem:[#allocation5 + $0x318] sm:$0xff]
    %v233 = vld [vmem:[#allocation5 + $0x320] sm:$0xff]
    %v234 = vld [vmem:[#allocation5 + $0x328] sm:$0xff]
    %v235 = vld [vmem:[#allocation5 + $0x330] sm:$0xff]
    %v236 = vld [vmem:[#allocation5 + $0x338] sm:$0xff]
    %v237 = vld [vmem:[#allocation5 + $0x340] sm:$0xff]
    %v238 = vld [vmem:[#allocation5 + $0x348] sm:$0xff]
    %v239 = vld [vmem:[#allocation5 + $0x350] sm:$0xff]
    %v240 = vld [vmem:[#allocation5 + $0x358] sm:$0xff]
    %v241 = vld [vmem:[#allocation5 + $0x360] sm:$0xff]
    %v242 = vld [vmem:[#allocation5 + $0x368] sm:$0xff]
    %v243 = vld [vmem:[#allocation5 + $0x370] sm:$0xff]
    %v244 = vld [vmem:[#allocation5 + $0x378] sm:$0xff]
    %v245 = vld [vmem:[#allocation5 + $0x380] sm:$0xff]
    %v246 = vld [vmem:[#allocation5 + $0x388] sm:$0xff]
    %v247 = vld [vmem:[#allocation5 + $0x390] sm:$0xff]
    %v248 = vld [vmem:[#allocation5 + $0x398] sm:$0xff]
    %v249 = vld [vmem:[#allocation5 + $0x3a0] sm:$0xff]
    %v250 = vld [vmem:[#allocation5 + $0x3a8] sm:$0xff]
    %v251 = vld [vmem:[#allocation5 + $0x3b0] sm:$0xff]
    %v252 = vld [vmem:[#allocation5 + $0x3b8] sm:$0xff]
    %v253 = vld [vmem:[#allocation5 + $0x3c0] sm:$0xff]
    %v254 = vld [vmem:[#allocation5 + $0x3c8] sm:$0xff]
    %v255 = vld [vmem:[#allocation5 + $0x3d0] sm:$0xff]
    %v256 = vld [vmem:[#allocation5 + $0x3d8] sm:$0xff]
    %v257 = vld [vmem:[#allocation5 + $0x3e0] sm:$0xff]
    %v258 = vld [vmem:[#allocation5 + $0x3e8] sm:$0xff]
    %v259 = vld [vmem:[#allocation5 + $0x3f0] sm:$0xff]
    %v260 = vld [vmem:[#allocation5 + $0x3f8] sm:$0xff]
    %v261 = vld [vmem:[#allocation5 + $0x400] sm:$0xff]
    %v262 = vld [vmem:[#allocation5 + $0x408] sm:$0xff]
    %v263 = vld [vmem:[#allocation5 + $0x410] sm:$0xff]
    %v264 = vld [vmem:[#allocation5 + $0x418] sm:$0xff]
    %v265 = vld [vmem:[#allocation5 + $0x420] sm:$0xff]
    %v266 = vld [vmem:[#allocation5 + $0x428] sm:$0xff]
    %v267 = vld [vmem:[#allocation5 + $0x430] sm:$0xff]
    %v268 = vld [vmem:[#allocation5 + $0x438] sm:$0xff]
    %v269 = vld [vmem:[#allocation5 + $0x440] sm:$0xff]
    %v270 = vld [vmem:[#allocation5 + $0x448] sm:$0xff]
    %v271 = vld [vmem:[#allocation5 + $0x450] sm:$0xff]
    %v272 = vld [vmem:[#allocation5 + $0x458] sm:$0xff]
    %v273 = vld [vmem:[#allocation5 + $0x460] sm:$0xff]
    %v274 = vld [vmem:[#allocation5 + $0x468] sm:$0xff]
    %v275 = vld [vmem:[#allocation5 + $0x470] sm:$0xff]
    %v276 = vld [vmem:[#allocation5 + $0x478] sm:$0xff]
    %v277 = vld [vmem:[#allocation5 + $0x480] sm:$0xff]
    %v278 = vld [vmem:[#allocation5 + $0x488] sm:$0xff]
    %v279 = vld [vmem:[#allocation5 + $0x490] sm:$0xff]
    %v280 = vld [vmem:[#allocation5 + $0x498] sm:$0xff]
    %v281 = vld [vmem:[#allocation5 + $0x4a0] sm:$0xff]
    %v282 = vld [vmem:[#allocation5 + $0x4a8] sm:$0xff]
    %v283 = vld [vmem:[#allocation5 + $0x4b0] sm:$0xff]
    %v284 = vld [vmem:[#allocation5 + $0x4b8] sm:$0xff]
    %v285 = vld [vmem:[#allocation5 + $0x4c0] sm:$0xff]
    %v286 = vld [vmem:[#allocation5 + $0x4c8] sm:$0xff]
    %v287 = vld [vmem:[#allocation5 + $0x4d0] sm:$0xff]
    %v288 = vld [vmem:[#allocation5 + $0x4d8] sm:$0xff]
    %v289 = vld [vmem:[#allocation5 + $0x4e0] sm:$0xff]
    %v290 = vld [vmem:[#allocation5 + $0x4e8] sm:$0xff]
    %v291 = vld [vmem:[#allocation5 + $0x4f0] sm:$0xff]
    %v292 = vld [vmem:[#allocation5 + $0x4f8] sm:$0xff]
    %v293 = vld [vmem:[#allocation5 + $0x500] sm:$0xff]
    %v294 = vld [vmem:[#allocation5 + $0x508] sm:$0xff]
    %v295 = vld [vmem:[#allocation5 + $0x510] sm:$0xff]
    %v296 = vld [vmem:[#allocation5 + $0x518] sm:$0xff]
    %v297 = vld [vmem:[#allocation5 + $0x520] sm:$0xff]
    %v298 = vld [vmem:[#allocation5 + $0x528] sm:$0xff]
    %v299 = vld [vmem:[#allocation5 + $0x530] sm:$0xff]
    %v300 = vld [vmem:[#allocation5 + $0x538] sm:$0xff]
    %v301 = vld [vmem:[#allocation5 + $0x540] sm:$0xff]
    %v302 = vld [vmem:[#allocation5 + $0x548] sm:$0xff]
    %v303 = vld [vmem:[#allocation5 + $0x550] sm:$0xff]
    %v304 = vld [vmem:[#allocation5 + $0x558] sm:$0xff]
    %v305 = vld [vmem:[#allocation5 + $0x560] sm:$0xff]
    %v306 = vld [vmem:[#allocation5 + $0x568] sm:$0xff]
    %v307 = vld [vmem:[#allocation5 + $0x570] sm:$0xff]
    %v308 = vld [vmem:[#allocation5 + $0x578] sm:$0xff]
    %v309 = vld [vmem:[#allocation5 + $0x580] sm:$0xff]
    %v310 = vld [vmem:[#allocation5 + $0x588] sm:$0xff]
    %v311 = vld [vmem:[#allocation5 + $0x590] sm:$0xff]
    %v312 = vld [vmem:[#allocation5 + $0x598] sm:$0xff]
    %v313 = vld [vmem:[#allocation5 + $0x5a0] sm:$0xff]
    %v314 = vld [vmem:[#allocation5 + $0x5a8] sm:$0xff]
    %v315 = vld [vmem:[#allocation5 + $0x5b0] sm:$0xff]
    %v316 = vld [vmem:[#allocation5 + $0x5b8] sm:$0xff]
    %v317 = vld [vmem:[#allocation5 + $0x5c0] sm:$0xff]
    %v318 = vld [vmem:[#allocation5 + $0x5c8] sm:$0xff]
    %v319 = vld [vmem:[#allocation5 + $0x5d0] sm:$0xff]
    %v320 = vld [vmem:[#allocation5 + $0x5d8] sm:$0xff]
    %v321 = vld [vmem:[#allocation5 + $0x5e0] sm:$0xff]
    %v322 = vld [vmem:[#allocation5 + $0x5e8] sm:$0xff]
    %v323 = vld [vmem:[#allocation5 + $0x5f0] sm:$0xff]
    %v324 = vld [vmem:[#allocation5 + $0x5f8] sm:$0xff]
    %v517 = vunpack.c.l.b16 %v133
    %v518 = vunpack.c.h.b16 %v133
    %v519 = vunpack.c.l.b16 %v134
    %v520 = vunpack.c.h.b16 %v134
    %v521 = vunpack.c.l.b16 %v135
    %v522 = vunpack.c.h.b16 %v135
    %v523 = vunpack.c.l.b16 %v136
    %v524 = vunpack.c.h.b16 %v136
    %v525 = vunpack.c.l.b16 %v137
    %v526 = vunpack.c.h.b16 %v137
    %v527 = vunpack.c.l.b16 %v138
    %v528 = vunpack.c.h.b16 %v138
    %v529 = vunpack.c.l.b16 %v139
    %v530 = vunpack.c.h.b16 %v139
    %v531 = vunpack.c.l.b16 %v140
    %v532 = vunpack.c.h.b16 %v140
    %v533 = vunpack.c.l.b16 %v141
    %v534 = vunpack.c.h.b16 %v141
    %v535 = vunpack.c.l.b16 %v142
    %v536 = vunpack.c.h.b16 %v142
    %v537 = vunpack.c.l.b16 %v143
    %v538 = vunpack.c.h.b16 %v143
    %v539 = vunpack.c.l.b16 %v144
    %v540 = vunpack.c.h.b16 %v144
    %v541 = vunpack.c.l.b16 %v145
    %v542 = vunpack.c.h.b16 %v145
    %v543 = vunpack.c.l.b16 %v146
    %v544 = vunpack.c.h.b16 %v146
    %v545 = vunpack.c.l.b16 %v147
    %v546 = vunpack.c.h.b16 %v147
    %v547 = vunpack.c.l.b16 %v148
    %v548 = vunpack.c.h.b16 %v148
    %v549 = vunpack.c.l.b16 %v149
    %v550 = vunpack.c.h.b16 %v149
    %v551 = vunpack.c.l.b16 %v150
    %v552 = vunpack.c.h.b16 %v150
    %v553 = vunpack.c.l.b16 %v151
    %v554 = vunpack.c.h.b16 %v151
    %v555 = vunpack.c.l.b16 %v152
    %v556 = vunpack.c.h.b16 %v152
    %v557 = vunpack.c.l.b16 %v153
    %v558 = vunpack.c.h.b16 %v153
    %v559 = vunpack.c.l.b16 %v154
    %v560 = vunpack.c.h.b16 %v154
    %v561 = vunpack.c.l.b16 %v155
    %v562 = vunpack.c.h.b16 %v155
    %v563 = vunpack.c.l.b16 %v156
    %v564 = vunpack.c.h.b16 %v156
    %v565 = vunpack.c.l.b16 %v157
    %v566 = vunpack.c.h.b16 %v157
    %v567 = vunpack.c.l.b16 %v158
    %v568 = vunpack.c.h.b16 %v158
    %v569 = vunpack.c.l.b16 %v159
    %v570 = vunpack.c.h.b16 %v159
    %v571 = vunpack.c.l.b16 %v160
    %v572 = vunpack.c.h.b16 %v160
    %v573 = vunpack.c.l.b16 %v161
    %v574 = vunpack.c.h.b16 %v161
    %v575 = vunpack.c.l.b16 %v162
    %v576 = vunpack.c.h.b16 %v162
    %v577 = vunpack.c.l.b16 %v163
    %v578 = vunpack.c.h.b16 %v163
    %v579 = vunpack.c.l.b16 %v164
    %v580 = vunpack.c.h.b16 %v164
    %v581 = vunpack.c.l.b16 %v165
    %v582 = vunpack.c.h.b16 %v165
    %v583 = vunpack.c.l.b16 %v166
    %v584 = vunpack.c.h.b16 %v166
    %v585 = vunpack.c.l.b16 %v167
    %v586 = vunpack.c.h.b16 %v167
    %v587 = vunpack.c.l.b16 %v168
    %v588 = vunpack.c.h.b16 %v168
    %v589 = vunpack.c.l.b16 %v169
    %v590 = vunpack.c.h.b16 %v169
    %v591 = vunpack.c.l.b16 %v170
    %v592 = vunpack.c.h.b16 %v170
    %v593 = vunpack.c.l.b16 %v171
    %v594 = vunpack.c.h.b16 %v171
    %v595 = vunpack.c.l.b16 %v172
    %v596 = vunpack.c.h.b16 %v172
    %v597 = vunpack.c.l.b16 %v173
    %v598 = vunpack.c.h.b16 %v173
    %v599 = vunpack.c.l.b16 %v174
    %v600 = vunpack.c.h.b16 %v174
    %v601 = vunpack.c.l.b16 %v175
    %v602 = vunpack.c.h.b16 %v175
    %v603 = vunpack.c.l.b16 %v176
    %v604 = vunpack.c.h.b16 %v176
    %v605 = vunpack.c.l.b16 %v177
    %v606 = vunpack.c.h.b16 %v177
    %v607 = vunpack.c.l.b16 %v178
    %v608 = vunpack.c.h.b16 %v178
    %v609 = vunpack.c.l.b16 %v179
    %v610 = vunpack.c.h.b16 %v179
    %v611 = vunpack.c.l.b16 %v180
    %v612 = vunpack.c.h.b16 %v180
    %v613 = vunpack.c.l.b16 %v181
    %v614 = vunpack.c.h.b16 %v181
    %v615 = vunpack.c.l.b16 %v182
    %v616 = vunpack.c.h.b16 %v182
    %v617 = vunpack.c.l.b16 %v183
    %v618 = vunpack.c.h.b16 %v183
    %v619 = vunpack.c.l.b16 %v184
    %v620 = vunpack.c.h.b16 %v184
    %v621 = vunpack.c.l.b16 %v185
    %v622 = vunpack.c.h.b16 %v185
    %v623 = vunpack.c.l.b16 %v186
    %v624 = vunpack.c.h.b16 %v186
    %v625 = vunpack.c.l.b16 %v187
    %v626 = vunpack.c.h.b16 %v187
    %v627 = vunpack.c.l.b16 %v188
    %v628 = vunpack.c.h.b16 %v188
    %v629 = vunpack.c.l.b16 %v189
    %v630 = vunpack.c.h.b16 %v189
    %v631 = vunpack.c.l.b16 %v190
    %v632 = vunpack.c.h.b16 %v190
    %v633 = vunpack.c.l.b16 %v191
    %v634 = vunpack.c.h.b16 %v191
    %v635 = vunpack.c.l.b16 %v192
    %v636 = vunpack.c.h.b16 %v192
    %v637 = vunpack.c.l.b16 %v193
    %v638 = vunpack.c.h.b16 %v193
    %v639 = vunpack.c.l.b16 %v194
    %v640 = vunpack.c.h.b16 %v194
    %v641 = vunpack.c.l.b16 %v195
    %v642 = vunpack.c.h.b16 %v195
    %v643 = vunpack.c.l.b16 %v196
    %v644 = vunpack.c.h.b16 %v196
    %v645 = vunpack.c.l.b16 %v197
    %v646 = vunpack.c.h.b16 %v197
    %v647 = vunpack.c.l.b16 %v198
    %v648 = vunpack.c.h.b16 %v198
    %v649 = vunpack.c.l.b16 %v199
    %v650 = vunpack.c.h.b16 %v199
    %v651 = vunpack.c.l.b16 %v200
    %v652 = vunpack.c.h.b16 %v200
    %v653 = vunpack.c.l.b16 %v201
    %v654 = vunpack.c.h.b16 %v201
    %v655 = vunpack.c.l.b16 %v202
    %v656 = vunpack.c.h.b16 %v202
    %v657 = vunpack.c.l.b16 %v203
    %v658 = vunpack.c.h.b16 %v203
    %v659 = vunpack.c.l.b16 %v204
    %v660 = vunpack.c.h.b16 %v204
    %v661 = vunpack.c.l.b16 %v205
    %v662 = vunpack.c.h.b16 %v205
    %v663 = vunpack.c.l.b16 %v206
    %v664 = vunpack.c.h.b16 %v206
    %v665 = vunpack.c.l.b16 %v207
    %v666 = vunpack.c.h.b16 %v207
    %v667 = vunpack.c.l.b16 %v208
    %v668 = vunpack.c.h.b16 %v208
    %v669 = vunpack.c.l.b16 %v209
    %v670 = vunpack.c.h.b16 %v209
    %v671 = vunpack.c.l.b16 %v210
    %v672 = vunpack.c.h.b16 %v210
    %v673 = vunpack.c.l.b16 %v211
    %v674 = vunpack.c.h.b16 %v211
    %v675 = vunpack.c.l.b16 %v212
    %v676 = vunpack.c.h.b16 %v212
    %v677 = vunpack.c.l.b16 %v213
    %v678 = vunpack.c.h.b16 %v213
    %v679 = vunpack.c.l.b16 %v214
    %v680 = vunpack.c.h.b16 %v214
    %v681 = vunpack.c.l.b16 %v215
    %v682 = vunpack.c.h.b16 %v215
    %v683 = vunpack.c.l.b16 %v216
    %v684 = vunpack.c.h.b16 %v216
    %v685 = vunpack.c.l.b16 %v217
    %v686 = vunpack.c.h.b16 %v217
    %v687 = vunpack.c.l.b16 %v218
    %v688 = vunpack.c.h.b16 %v218
    %v689 = vunpack.c.l.b16 %v219
    %v690 = vunpack.c.h.b16 %v219
    %v691 = vunpack.c.l.b16 %v220
    %v692 = vunpack.c.h.b16 %v220
    %v693 = vunpack.c.l.b16 %v221
    %v694 = vunpack.c.h.b16 %v221
    %v695 = vunpack.c.l.b16 %v222
    %v696 = vunpack.c.h.b16 %v222
    %v697 = vunpack.c.l.b16 %v223
    %v698 = vunpack.c.h.b16 %v223
    %v699 = vunpack.c.l.b16 %v224
    %v700 = vunpack.c.h.b16 %v224
    %v701 = vunpack.c.l.b16 %v225
    %v702 = vunpack.c.h.b16 %v225
    %v703 = vunpack.c.l.b16 %v226
    %v704 = vunpack.c.h.b16 %v226
    %v705 = vunpack.c.l.b16 %v227
    %v706 = vunpack.c.h.b16 %v227
    %v707 = vunpack.c.l.b16 %v228
    %v708 = vunpack.c.h.b16 %v228
    %v709 = vunpack.c.l.b16 %v229
    %v710 = vunpack.c.h.b16 %v229
    %v711 = vunpack.c.l.b16 %v230
    %v712 = vunpack.c.h.b16 %v230
    %v713 = vunpack.c.l.b16 %v231
    %v714 = vunpack.c.h.b16 %v231
    %v715 = vunpack.c.l.b16 %v232
    %v716 = vunpack.c.h.b16 %v232
    %v717 = vunpack.c.l.b16 %v233
    %v718 = vunpack.c.h.b16 %v233
    %v719 = vunpack.c.l.b16 %v234
    %v720 = vunpack.c.h.b16 %v234
    %v721 = vunpack.c.l.b16 %v235
    %v722 = vunpack.c.h.b16 %v235
    %v723 = vunpack.c.l.b16 %v236
    %v724 = vunpack.c.h.b16 %v236
    %v725 = vunpack.c.l.b16 %v237
    %v726 = vunpack.c.h.b16 %v237
    %v727 = vunpack.c.l.b16 %v238
    %v728 = vunpack.c.h.b16 %v238
    %v729 = vunpack.c.l.b16 %v239
    %v730 = vunpack.c.h.b16 %v239
    %v731 = vunpack.c.l.b16 %v240
    %v732 = vunpack.c.h.b16 %v240
    %v733 = vunpack.c.l.b16 %v241
    %v734 = vunpack.c.h.b16 %v241
    %v735 = vunpack.c.l.b16 %v242
    %v736 = vunpack.c.h.b16 %v242
    %v737 = vunpack.c.l.b16 %v243
    %v738 = vunpack.c.h.b16 %v243
    %v739 = vunpack.c.l.b16 %v244
    %v740 = vunpack.c.h.b16 %v244
    %v741 = vunpack.c.l.b16 %v245
    %v742 = vunpack.c.h.b16 %v245
    %v743 = vunpack.c.l.b16 %v246
    %v744 = vunpack.c.h.b16 %v246
    %v745 = vunpack.c.l.b16 %v247
    %v746 = vunpack.c.h.b16 %v247
    %v747 = vunpack.c.l.b16 %v248
    %v748 = vunpack.c.h.b16 %v248
    %v749 = vunpack.c.l.b16 %v249
    %v750 = vunpack.c.h.b16 %v249
    %v751 = vunpack.c.l.b16 %v250
    %v752 = vunpack.c.h.b16 %v250
    %v753 = vunpack.c.l.b16 %v251
    %v754 = vunpack.c.h.b16 %v251
    %v755 = vunpack.c.l.b16 %v252
    %v756 = vunpack.c.h.b16 %v252
    %v757 = vunpack.c.l.b16 %v253
    %v758 = vunpack.c.h.b16 %v253
    %v759 = vunpack.c.l.b16 %v254
    %v760 = vunpack.c.h.b16 %v254
    %v761 = vunpack.c.l.b16 %v255
    %v762 = vunpack.c.h.b16 %v255
    %v763 = vunpack.c.l.b16 %v256
    %v764 = vunpack.c.h.b16 %v256
    %v765 = vunpack.c.l.b16 %v257
    %v766 = vunpack.c.h.b16 %v257
    %v767 = vunpack.c.l.b16 %v258
    %v768 = vunpack.c.h.b16 %v258
    %v769 = vunpack.c.l.b16 %v259
    %v770 = vunpack.c.h.b16 %v259
    %v771 = vunpack.c.l.b16 %v260
    %v772 = vunpack.c.h.b16 %v260
    %v773 = vunpack.c.l.b16 %v261
    %v774 = vunpack.c.h.b16 %v261
    %v775 = vunpack.c.l.b16 %v262
    %v776 = vunpack.c.h.b16 %v262
    %v777 = vunpack.c.l.b16 %v263
    %v778 = vunpack.c.h.b16 %v263
    %v779 = vunpack.c.l.b16 %v264
    %v780 = vunpack.c.h.b16 %v264
    %v781 = vunpack.c.l.b16 %v265
    %v782 = vunpack.c.h.b16 %v265
    %v783 = vunpack.c.l.b16 %v266
    %v784 = vunpack.c.h.b16 %v266
    %v785 = vunpack.c.l.b16 %v267
    %v786 = vunpack.c.h.b16 %v267
    %v787 = vunpack.c.l.b16 %v268
    %v788 = vunpack.c.h.b16 %v268
    %v789 = vunpack.c.l.b16 %v269
    %v790 = vunpack.c.h.b16 %v269
    %v791 = vunpack.c.l.b16 %v270
    %v792 = vunpack.c.h.b16 %v270
    %v793 = vunpack.c.l.b16 %v271
    %v794 = vunpack.c.h.b16 %v271
    %v795 = vunpack.c.l.b16 %v272
    %v796 = vunpack.c.h.b16 %v272
    %v797 = vunpack.c.l.b16 %v273
    %v798 = vunpack.c.h.b16 %v273
    %v799 = vunpack.c.l.b16 %v274
    %v800 = vunpack.c.h.b16 %v274
    %v801 = vunpack.c.l.b16 %v275
    %v802 = vunpack.c.h.b16 %v275
    %v803 = vunpack.c.l.b16 %v276
    %v804 = vunpack.c.h.b16 %v276
    %v805 = vunpack.c.l.b16 %v277
    %v806 = vunpack.c.h.b16 %v277
    %v807 = vunpack.c.l.b16 %v278
    %v808 = vunpack.c.h.b16 %v278
    %v809 = vunpack.c.l.b16 %v279
    %v810 = vunpack.c.h.b16 %v279
    %v811 = vunpack.c.l.b16 %v280
    %v812 = vunpack.c.h.b16 %v280
    %v813 = vunpack.c.l.b16 %v281
    %v814 = vunpack.c.h.b16 %v281
    %v815 = vunpack.c.l.b16 %v282
    %v816 = vunpack.c.h.b16 %v282
    %v817 = vunpack.c.l.b16 %v283
    %v818 = vunpack.c.h.b16 %v283
    %v819 = vunpack.c.l.b16 %v284
    %v820 = vunpack.c.h.b16 %v284
    %v821 = vunpack.c.l.b16 %v285
    %v822 = vunpack.c.h.b16 %v285
    %v823 = vunpack.c.l.b16 %v286
    %v824 = vunpack.c.h.b16 %v286
    %v825 = vunpack.c.l.b16 %v287
    %v826 = vunpack.c.h.b16 %v287
    %v827 = vunpack.c.l.b16 %v288
    %v828 = vunpack.c.h.b16 %v288
    %v829 = vunpack.c.l.b16 %v289
    %v830 = vunpack.c.h.b16 %v289
    %v831 = vunpack.c.l.b16 %v290
    %v832 = vunpack.c.h.b16 %v290
    %v833 = vunpack.c.l.b16 %v291
    %v834 = vunpack.c.h.b16 %v291
    %v835 = vunpack.c.l.b16 %v292
    %v836 = vunpack.c.h.b16 %v292
    %v837 = vunpack.c.l.b16 %v293
    %v838 = vunpack.c.h.b16 %v293
    %v839 = vunpack.c.l.b16 %v294
    %v840 = vunpack.c.h.b16 %v294
    %v841 = vunpack.c.l.b16 %v295
    %v842 = vunpack.c.h.b16 %v295
    %v843 = vunpack.c.l.b16 %v296
    %v844 = vunpack.c.h.b16 %v296
    %v845 = vunpack.c.l.b16 %v297
    %v846 = vunpack.c.h.b16 %v297
    %v847 = vunpack.c.l.b16 %v298
    %v848 = vunpack.c.h.b16 %v298
    %v849 = vunpack.c.l.b16 %v299
    %v850 = vunpack.c.h.b16 %v299
    %v851 = vunpack.c.l.b16 %v300
    %v852 = vunpack.c.h.b16 %v300
    %v853 = vunpack.c.l.b16 %v301
    %v854 = vunpack.c.h.b16 %v301
    %v855 = vunpack.c.l.b16 %v302
    %v856 = vunpack.c.h.b16 %v302
    %v857 = vunpack.c.l.b16 %v303
    %v858 = vunpack.c.h.b16 %v303
    %v859 = vunpack.c.l.b16 %v304
    %v860 = vunpack.c.h.b16 %v304
    %v861 = vunpack.c.l.b16 %v305
    %v862 = vunpack.c.h.b16 %v305
    %v863 = vunpack.c.l.b16 %v306
    %v864 = vunpack.c.h.b16 %v306
    %v865 = vunpack.c.l.b16 %v307
    %v866 = vunpack.c.h.b16 %v307
    %v867 = vunpack.c.l.b16 %v308
    %v868 = vunpack.c.h.b16 %v308
    %v869 = vunpack.c.l.b16 %v309
    %v870 = vunpack.c.h.b16 %v309
    %v871 = vunpack.c.l.b16 %v310
    %v872 = vunpack.c.h.b16 %v310
    %v873 = vunpack.c.l.b16 %v311
    %v874 = vunpack.c.h.b16 %v311
    %v875 = vunpack.c.l.b16 %v312
    %v876 = vunpack.c.h.b16 %v312
    %v877 = vunpack.c.l.b16 %v313
    %v878 = vunpack.c.h.b16 %v313
    %v879 = vunpack.c.l.b16 %v314
    %v880 = vunpack.c.h.b16 %v314
    %v881 = vunpack.c.l.b16 %v315
    %v882 = vunpack.c.h.b16 %v315
    %v883 = vunpack.c.l.b16 %v316
    %v884 = vunpack.c.h.b16 %v316
    %v885 = vunpack.c.l.b16 %v317
    %v886 = vunpack.c.h.b16 %v317
    %v887 = vunpack.c.l.b16 %v318
    %v888 = vunpack.c.h.b16 %v318
    %v889 = vunpack.c.l.b16 %v319
    %v890 = vunpack.c.h.b16 %v319
    %v891 = vunpack.c.l.b16 %v320
    %v892 = vunpack.c.h.b16 %v320
    %v893 = vunpack.c.l.b16 %v321
    %v894 = vunpack.c.h.b16 %v321
    %v895 = vunpack.c.l.b16 %v322
    %v896 = vunpack.c.h.b16 %v322
    %v897 = vunpack.c.l.b16 %v323
    %v898 = vunpack.c.h.b16 %v323
    %v899 = vunpack.c.l.b16 %v324
    %v900 = vunpack.c.h.b16 %v324
    %v901 = vpack.c.b16 %v523, %v517
    %v902 = vpack.c.b16 %v524, %v518
    %v903 = vpack.c.b16 %v525, %v519
    %v904 = vpack.c.b16 %v526, %v520
    %v905 = vpack.c.b16 %v527, %v521
    %v906 = vpack.c.b16 %v528, %v522
    %v907 = vpack.c.b16 %v535, %v529
    %v908 = vpack.c.b16 %v536, %v530
    %v909 = vpack.c.b16 %v537, %v531
    %v910 = vpack.c.b16 %v538, %v532
    %v911 = vpack.c.b16 %v539, %v533
    %v912 = vpack.c.b16 %v540, %v534
    %v913 = vpack.c.b16 %v547, %v541
    %v914 = vpack.c.b16 %v548, %v542
    %v915 = vpack.c.b16 %v549, %v543
    %v916 = vpack.c.b16 %v550, %v544
    %v917 = vpack.c.b16 %v551, %v545
    %v918 = vpack.c.b16 %v552, %v546
    %v919 = vpack.c.b16 %v559, %v553
    %v920 = vpack.c.b16 %v560, %v554
    %v921 = vpack.c.b16 %v561, %v555
    %v922 = vpack.c.b16 %v562, %v556
    %v923 = vpack.c.b16 %v563, %v557
    %v924 = vpack.c.b16 %v564, %v558
    %v925 = vpack.c.b16 %v571, %v565
    %v926 = vpack.c.b16 %v572, %v566
    %v927 = vpack.c.b16 %v573, %v567
    %v928 = vpack.c.b16 %v574, %v568
    %v929 = vpack.c.b16 %v575, %v569
    %v930 = vpack.c.b16 %v576, %v570
    %v931 = vpack.c.b16 %v583, %v577
    %v932 = vpack.c.b16 %v584, %v578
    %v933 = vpack.c.b16 %v585, %v579
    %v934 = vpack.c.b16 %v586, %v580
    %v935 = vpack.c.b16 %v587, %v581
    %v936 = vpack.c.b16 %v588, %v582
    %v937 = vpack.c.b16 %v595, %v589
    %v938 = vpack.c.b16 %v596, %v590
    %v939 = vpack.c.b16 %v597, %v591
    %v940 = vpack.c.b16 %v598, %v592
    %v941 = vpack.c.b16 %v599, %v593
    %v942 = vpack.c.b16 %v600, %v594
    %v943 = vpack.c.b16 %v607, %v601
    %v944 = vpack.c.b16 %v608, %v602
    %v945 = vpack.c.b16 %v609, %v603
    %v946 = vpack.c.b16 %v610, %v604
    %v947 = vpack.c.b16 %v611, %v605
    %v948 = vpack.c.b16 %v612, %v606
    %v949 = vpack.c.b16 %v619, %v613
    %v950 = vpack.c.b16 %v620, %v614
    %v951 = vpack.c.b16 %v621, %v615
    %v952 = vpack.c.b16 %v622, %v616
    %v953 = vpack.c.b16 %v623, %v617
    %v954 = vpack.c.b16 %v624, %v618
    %v955 = vpack.c.b16 %v631, %v625
    %v956 = vpack.c.b16 %v632, %v626
    %v957 = vpack.c.b16 %v633, %v627
    %v958 = vpack.c.b16 %v634, %v628
    %v959 = vpack.c.b16 %v635, %v629
    %v960 = vpack.c.b16 %v636, %v630
    %v961 = vpack.c.b16 %v643, %v637
    %v962 = vpack.c.b16 %v644, %v638
    %v963 = vpack.c.b16 %v645, %v639
    %v964 = vpack.c.b16 %v646, %v640
    %v965 = vpack.c.b16 %v647, %v641
    %v966 = vpack.c.b16 %v648, %v642
    %v967 = vpack.c.b16 %v655, %v649
    %v968 = vpack.c.b16 %v656, %v650
    %v969 = vpack.c.b16 %v657, %v651
    %v970 = vpack.c.b16 %v658, %v652
    %v971 = vpack.c.b16 %v659, %v653
    %v972 = vpack.c.b16 %v660, %v654
    %v973 = vpack.c.b16 %v667, %v661
    %v974 = vpack.c.b16 %v668, %v662
    %v975 = vpack.c.b16 %v669, %v663
    %v976 = vpack.c.b16 %v670, %v664
    %v977 = vpack.c.b16 %v671, %v665
    %v978 = vpack.c.b16 %v672, %v666
    %v979 = vpack.c.b16 %v679, %v673
    %v980 = vpack.c.b16 %v680, %v674
    %v981 = vpack.c.b16 %v681, %v675
    %v982 = vpack.c.b16 %v682, %v676
    %v983 = vpack.c.b16 %v683, %v677
    %v984 = vpack.c.b16 %v684, %v678
    %v985 = vpack.c.b16 %v691, %v685
    %v986 = vpack.c.b16 %v692, %v686
    %v987 = vpack.c.b16 %v693, %v687
    %v988 = vpack.c.b16 %v694, %v688
    %v989 = vpack.c.b16 %v695, %v689
    %v990 = vpack.c.b16 %v696, %v690
    %v991 = vpack.c.b16 %v703, %v697
    %v992 = vpack.c.b16 %v704, %v698
    %v993 = vpack.c.b16 %v705, %v699
    %v994 = vpack.c.b16 %v706, %v700
    %v995 = vpack.c.b16 %v707, %v701
    %v996 = vpack.c.b16 %v708, %v702
    %v997 = vpack.c.b16 %v715, %v709
    %v998 = vpack.c.b16 %v716, %v710
    %v999 = vpack.c.b16 %v717, %v711
    %v1000 = vpack.c.b16 %v718, %v712
    %v1001 = vpack.c.b16 %v719, %v713
    %v1002 = vpack.c.b16 %v720, %v714
    %v1003 = vpack.c.b16 %v727, %v721
    %v1004 = vpack.c.b16 %v728, %v722
    %v1005 = vpack.c.b16 %v729, %v723
    %v1006 = vpack.c.b16 %v730, %v724
    %v1007 = vpack.c.b16 %v731, %v725
    %v1008 = vpack.c.b16 %v732, %v726
    %v1009 = vpack.c.b16 %v739, %v733
    %v1010 = vpack.c.b16 %v740, %v734
    %v1011 = vpack.c.b16 %v741, %v735
    %v1012 = vpack.c.b16 %v742, %v736
    %v1013 = vpack.c.b16 %v743, %v737
    %v1014 = vpack.c.b16 %v744, %v738
    %v1015 = vpack.c.b16 %v751, %v745
    %v1016 = vpack.c.b16 %v752, %v746
    %v1017 = vpack.c.b16 %v753, %v747
    %v1018 = vpack.c.b16 %v754, %v748
    %v1019 = vpack.c.b16 %v755, %v749
    %v1020 = vpack.c.b16 %v756, %v750
    %v1021 = vpack.c.b16 %v763, %v757
    %v1022 = vpack.c.b16 %v764, %v758
    %v1023 = vpack.c.b16 %v765, %v759
    %v1024 = vpack.c.b16 %v766, %v760
    %v1025 = vpack.c.b16 %v767, %v761
    %v1026 = vpack.c.b16 %v768, %v762
    %v1027 = vpack.c.b16 %v775, %v769
    %v1028 = vpack.c.b16 %v776, %v770
    %v1029 = vpack.c.b16 %v777, %v771
    %v1030 = vpack.c.b16 %v778, %v772
    %v1031 = vpack.c.b16 %v779, %v773
    %v1032 = vpack.c.b16 %v780, %v774
    %v1033 = vpack.c.b16 %v787, %v781
    %v1034 = vpack.c.b16 %v788, %v782
    %v1035 = vpack.c.b16 %v789, %v783
    %v1036 = vpack.c.b16 %v790, %v784
    %v1037 = vpack.c.b16 %v791, %v785
    %v1038 = vpack.c.b16 %v792, %v786
    %v1039 = vpack.c.b16 %v799, %v793
    %v1040 = vpack.c.b16 %v800, %v794
    %v1041 = vpack.c.b16 %v801, %v795
    %v1042 = vpack.c.b16 %v802, %v796
    %v1043 = vpack.c.b16 %v803, %v797
    %v1044 = vpack.c.b16 %v804, %v798
    %v1045 = vpack.c.b16 %v811, %v805
    %v1046 = vpack.c.b16 %v812, %v806
    %v1047 = vpack.c.b16 %v813, %v807
    %v1048 = vpack.c.b16 %v814, %v808
    %v1049 = vpack.c.b16 %v815, %v809
    %v1050 = vpack.c.b16 %v816, %v810
    %v1051 = vpack.c.b16 %v823, %v817
    %v1052 = vpack.c.b16 %v824, %v818
    %v1053 = vpack.c.b16 %v825, %v819
    %v1054 = vpack.c.b16 %v826, %v820
    %v1055 = vpack.c.b16 %v827, %v821
    %v1056 = vpack.c.b16 %v828, %v822
    %v1057 = vpack.c.b16 %v835, %v829
    %v1058 = vpack.c.b16 %v836, %v830
    %v1059 = vpack.c.b16 %v837, %v831
    %v1060 = vpack.c.b16 %v838, %v832
    %v1061 = vpack.c.b16 %v839, %v833
    %v1062 = vpack.c.b16 %v840, %v834
    %v1063 = vpack.c.b16 %v847, %v841
    %v1064 = vpack.c.b16 %v848, %v842
    %v1065 = vpack.c.b16 %v849, %v843
    %v1066 = vpack.c.b16 %v850, %v844
    %v1067 = vpack.c.b16 %v851, %v845
    %v1068 = vpack.c.b16 %v852, %v846
    %v1069 = vpack.c.b16 %v859, %v853
    %v1070 = vpack.c.b16 %v860, %v854
    %v1071 = vpack.c.b16 %v861, %v855
    %v1072 = vpack.c.b16 %v862, %v856
    %v1073 = vpack.c.b16 %v863, %v857
    %v1074 = vpack.c.b16 %v864, %v858
    %v1075 = vpack.c.b16 %v871, %v865
    %v1076 = vpack.c.b16 %v872, %v866
    %v1077 = vpack.c.b16 %v873, %v867
    %v1078 = vpack.c.b16 %v874, %v868
    %v1079 = vpack.c.b16 %v875, %v869
    %v1080 = vpack.c.b16 %v876, %v870
    %v1081 = vpack.c.b16 %v883, %v877
    %v1082 = vpack.c.b16 %v884, %v878
    %v1083 = vpack.c.b16 %v885, %v879
    %v1084 = vpack.c.b16 %v886, %v880
    %v1085 = vpack.c.b16 %v887, %v881
    %v1086 = vpack.c.b16 %v888, %v882
    %v1087 = vpack.c.b16 %v895, %v889
    %v1088 = vpack.c.b16 %v896, %v890
    %v1089 = vpack.c.b16 %v897, %v891
    %v1090 = vpack.c.b16 %v898, %v892
    %v1091 = vpack.c.b16 %v899, %v893
    %v1092 = vpack.c.b16 %v900, %v894
    %1285 = vmatprep.subr.bf16.mxu0 %v944
    %1286 = vmatpush1.bf16.msra.mxu0 %v943
    %1287 = vmatprep.subr.bf16.mxu0 %v938
    %1288 = vmatpush1.bf16.msra.mxu0 %v937
    %1289 = vmatprep.subr.bf16.mxu0 %v932
    %1290 = vmatpush1.bf16.msra.mxu0 %v931
    %1291 = vmatprep.subr.bf16.mxu0 %v926
    %1292 = vmatpush1.bf16.msra.mxu0 %v925
    %1293 = vmatprep.subr.bf16.mxu0 %v920
    %1294 = vmatpush1.bf16.msra.mxu0 %v919
    %1295 = vmatprep.subr.bf16.mxu0 %v914
    %1296 = vmatpush1.bf16.msra.mxu0 %v913
    %1297 = vmatprep.subr.bf16.mxu0 %v908
    %1298 = vmatpush1.bf16.msra.mxu0 %v907
    %1299 = vmatprep.subr.bf16.mxu0 %v902
    %1300 = vmatpush1.bf16.msra.mxu0 %v901
    %1301 = vmatprep.subr.bf16.mxu0 %v992
    %1302 = vmatpush2.bf16.msra.mxu0 %v991
    %1303 = vmatprep.subr.bf16.mxu0 %v986
    %1304 = vmatpush2.bf16.msra.mxu0 %v985
    %1305 = vmatprep.subr.bf16.mxu0 %v980
    %1306 = vmatpush2.bf16.msra.mxu0 %v979
    %1307 = vmatprep.subr.bf16.mxu0 %v974
    %1308 = vmatpush2.bf16.msra.mxu0 %v973
    %1309 = vmatprep.subr.bf16.mxu0 %v968
    %1310 = vmatpush2.bf16.msra.mxu0 %v967
    %1311 = vmatprep.subr.bf16.mxu0 %v962
    %1312 = vmatpush2.bf16.msra.mxu0 %v961
    %1313 = vmatprep.subr.bf16.mxu0 %v956
    %1314 = vmatpush2.bf16.msra.mxu0 %v955
    %1315 = vmatprep.subr.bf16.mxu0 %v950
    %1316 = vmatpush2.bf16.msra.mxu0 %v949
    %1317 = vmatprep.mubr.bf16.mxu0 %v126
    %1318 = vmatmul.mubr.bf16.gmra.mxu0 %v125
    %v1319 = vpop.f32.mrf.mxu0
    %v1320 = vadd.f32 0.0, %v1319
    %v1321 = vpop.f32.mrf.mxu0
    %v1322 = vadd.f32 0.0, %v1321
    %v1323 = vpop.f32.mrf.mxu0
    %v1324 = vadd.f32 0.0, %v1323
    %v1325 = vpop.f32.mrf.mxu0
    %v1326 = vadd.f32 0.0, %v1325
    %1327 = vmatprep.mubr.bf16.mxu0 %v130
    %1328 = vmatmul.mubr.bf16.gmra.mxu0 %v129
    %v1329 = vpop.f32.mrf.mxu0
    %v1330 = vadd.f32 0.0, %v1329
    %v1331 = vpop.f32.mrf.mxu0
    %v1332 = vadd.f32 0.0, %v1331
    %v1333 = vpop.f32.mrf.mxu0
    %v1334 = vpop.f32.mrf.mxu0
    %1335 = vdwg.mxu0
    %1336 = vmatprep.subr.bf16.mxu0 %v1040
    %1337 = vmatpush1.bf16.msra.mxu0 %v1039
    %1338 = vmatprep.subr.bf16.mxu0 %v1034
    %1339 = vmatpush1.bf16.msra.mxu0 %v1033
    %1340 = vmatprep.subr.bf16.mxu0 %v1028
    %1341 = vmatpush1.bf16.msra.mxu0 %v1027
    %1342 = vmatprep.subr.bf16.mxu0 %v1022
    %1343 = vmatpush1.bf16.msra.mxu0 %v1021
    %1344 = vmatprep.subr.bf16.mxu0 %v1016
    %1345 = vmatpush1.bf16.msra.mxu0 %v1015
    %1346 = vmatprep.subr.bf16.mxu0 %v1010
    %1347 = vmatpush1.bf16.msra.mxu0 %v1009
    %1348 = vmatprep.subr.bf16.mxu0 %v1004
    %1349 = vmatpush1.bf16.msra.mxu0 %v1003
    %1350 = vmatprep.subr.bf16.mxu0 %v998
    %1351 = vmatpush1.bf16.msra.mxu0 %v997
    %1352 = vmatprep.subr.bf16.mxu0 %v1088
    %1353 = vmatpush2.bf16.msra.mxu0 %v1087
    %1354 = vmatprep.subr.bf16.mxu0 %v1082
    %1355 = vmatpush2.bf16.msra.mxu0 %v1081
    %1356 = vmatprep.subr.bf16.mxu0 %v1076
    %1357 = vmatpush2.bf16.msra.mxu0 %v1075
    %1358 = vmatprep.subr.bf16.mxu0 %v1070
    %1359 = vmatpush2.bf16.msra.mxu0 %v1069
    %1360 = vmatprep.subr.bf16.mxu0 %v1064
    %1361 = vmatpush2.bf16.msra.mxu0 %v1063
    %1362 = vmatprep.subr.bf16.mxu0 %v1058
    %1363 = vmatpush2.bf16.msra.mxu0 %v1057
    %1364 = vmatprep.subr.bf16.mxu0 %v1052
    %1365 = vmatpush2.bf16.msra.mxu0 %v1051
    %1366 = vmatprep.subr.bf16.mxu0 %v1046
    %1367 = vmatpush2.bf16.msra.mxu0 %v1045
    %1368 = vmatprep.mubr.bf16.mxu0 %v128
    %1369 = vmatmul.mubr.bf16.gmra.mxu0 %v127
    %v1370 = vpop.f32.mrf.mxu0
    %v1371 = vadd.f32 %v1320, %v1370
    %v1372 = vpop.f32.mrf.mxu0
    %v1373 = vadd.f32 %v1322, %v1372
    %v1374 = vpop.f32.mrf.mxu0
    %v1375 = vadd.f32 %v1324, %v1374
    %v1376 = vpop.f32.mrf.mxu0
    %v1377 = vadd.f32 %v1326, %v1376
    %1378 = vmatprep.mubr.bf16.mxu0 %v132
    %1379 = vmatmul.mubr.bf16.gmra.mxu0 %v131
    %v1380 = vpop.f32.mrf.mxu0
    %v1381 = vadd.f32 %v1330, %v1380
    %v1382 = vpop.f32.mrf.mxu0
    %v1383 = vadd.f32 %v1332, %v1382
    %v1384 = vpop.f32.mrf.mxu0
    %v1385 = vpop.f32.mrf.mxu0
    %1386 = vdwg.mxu0
    %1387 = vmatprep.subr.bf16.mxu0 %v946
    %1388 = vmatpush1.bf16.msra.mxu0 %v945
    %1389 = vmatprep.subr.bf16.mxu0 %v940
    %1390 = vmatpush1.bf16.msra.mxu0 %v939
    %1391 = vmatprep.subr.bf16.mxu0 %v934
    %1392 = vmatpush1.bf16.msra.mxu0 %v933
    %1393 = vmatprep.subr.bf16.mxu0 %v928
    %1394 = vmatpush1.bf16.msra.mxu0 %v927
    %1395 = vmatprep.subr.bf16.mxu0 %v922
    %1396 = vmatpush1.bf16.msra.mxu0 %v921
    %1397 = vmatprep.subr.bf16.mxu0 %v916
    %1398 = vmatpush1.bf16.msra.mxu0 %v915
    %1399 = vmatprep.subr.bf16.mxu0 %v910
    %1400 = vmatpush1.bf16.msra.mxu0 %v909
    %1401 = vmatprep.subr.bf16.mxu0 %v904
    %1402 = vmatpush1.bf16.msra.mxu0 %v903
    %1403 = vmatprep.subr.bf16.mxu0 %v994
    %1404 = vmatpush2.bf16.msra.mxu0 %v993
    %1405 = vmatprep.subr.bf16.mxu0 %v988
    %1406 = vmatpush2.bf16.msra.mxu0 %v987
    %1407 = vmatprep.subr.bf16.mxu0 %v982
    %1408 = vmatpush2.bf16.msra.mxu0 %v981
    %1409 = vmatprep.subr.bf16.mxu0 %v976
    %1410 = vmatpush2.bf16.msra.mxu0 %v975
    %1411 = vmatprep.subr.bf16.mxu0 %v970
    %1412 = vmatpush2.bf16.msra.mxu0 %v969
    %1413 = vmatprep.subr.bf16.mxu0 %v964
    %1414 = vmatpush2.bf16.msra.mxu0 %v963
    %1415 = vmatprep.subr.bf16.mxu0 %v958
    %1416 = vmatpush2.bf16.msra.mxu0 %v957
    %1417 = vmatprep.subr.bf16.mxu0 %v952
    %1418 = vmatpush2.bf16.msra.mxu0 %v951
    %1419 = vmatprep.mubr.bf16.mxu0 %v126
    %1420 = vmatmul.mubr.bf16.gmra.mxu0 %v125
    %v1421 = vpop.f32.mrf.mxu0
    %v1422 = vadd.f32 0.0, %v1421
    %v1423 = vpop.f32.mrf.mxu0
    %v1424 = vadd.f32 0.0, %v1423
    %v1425 = vpop.f32.mrf.mxu0
    %v1426 = vadd.f32 0.0, %v1425
    %v1427 = vpop.f32.mrf.mxu0
    %v1428 = vadd.f32 0.0, %v1427
    %1429 = vmatprep.mubr.bf16.mxu0 %v130
    %1430 = vmatmul.mubr.bf16.gmra.mxu0 %v129
    %v1431 = vpop.f32.mrf.mxu0
    %v1432 = vadd.f32 0.0, %v1431
    %v1433 = vpop.f32.mrf.mxu0
    %v1434 = vadd.f32 0.0, %v1433
    %v1435 = vpop.f32.mrf.mxu0
    %v1436 = vpop.f32.mrf.mxu0
    %1437 = vdwg.mxu0
    %1438 = vmatprep.subr.bf16.mxu0 %v1042
    %1439 = vmatpush1.bf16.msra.mxu0 %v1041
    %1440 = vmatprep.subr.bf16.mxu0 %v1036
    %1441 = vmatpush1.bf16.msra.mxu0 %v1035
    %1442 = vmatprep.subr.bf16.mxu0 %v1030
    %1443 = vmatpush1.bf16.msra.mxu0 %v1029
    %1444 = vmatprep.subr.bf16.mxu0 %v1024
    %1445 = vmatpush1.bf16.msra.mxu0 %v1023
    %1446 = vmatprep.subr.bf16.mxu0 %v1018
    %1447 = vmatpush1.bf16.msra.mxu0 %v1017
    %1448 = vmatprep.subr.bf16.mxu0 %v1012
    %1449 = vmatpush1.bf16.msra.mxu0 %v1011
    %1450 = vmatprep.subr.bf16.mxu0 %v1006
    %1451 = vmatpush1.bf16.msra.mxu0 %v1005
    %1452 = vmatprep.subr.bf16.mxu0 %v1000
    %1453 = vmatpush1.bf16.msra.mxu0 %v999
    %1454 = vmatprep.subr.bf16.mxu0 %v1090
    %1455 = vmatpush2.bf16.msra.mxu0 %v1089
    %1456 = vmatprep.subr.bf16.mxu0 %v1084
    %1457 = vmatpush2.bf16.msra.mxu0 %v1083
    %1458 = vmatprep.subr.bf16.mxu0 %v1078
    %1459 = vmatpush2.bf16.msra.mxu0 %v1077
    %1460 = vmatprep.subr.bf16.mxu0 %v1072
    %1461 = vmatpush2.bf16.msra.mxu0 %v1071
    %1462 = vmatprep.subr.bf16.mxu0 %v1066
    %1463 = vmatpush2.bf16.msra.mxu0 %v1065
    %1464 = vmatprep.subr.bf16.mxu0 %v1060
    %1465 = vmatpush2.bf16.msra.mxu0 %v1059
    %1466 = vmatprep.subr.bf16.mxu0 %v1054
    %1467 = vmatpush2.bf16.msra.mxu0 %v1053
    %1468 = vmatprep.subr.bf16.mxu0 %v1048
    %1469 = vmatpush2.bf16.msra.mxu0 %v1047
    %1470 = vmatprep.mubr.bf16.mxu0 %v128
    %1471 = vmatmul.mubr.bf16.gmra.mxu0 %v127
    %v1472 = vpop.f32.mrf.mxu0
    %v1473 = vadd.f32 %v1422, %v1472
    %v1474 = vpop.f32.mrf.mxu0
    %v1475 = vadd.f32 %v1424, %v1474
    %v1476 = vpop.f32.mrf.mxu0
    %v1477 = vadd.f32 %v1426, %v1476
    %v1478 = vpop.f32.mrf.mxu0
    %v1479 = vadd.f32 %v1428, %v1478
    %1480 = vmatprep.mubr.bf16.mxu0 %v132
    %1481 = vmatmul.mubr.bf16.gmra.mxu0 %v131
    %v1482 = vpop.f32.mrf.mxu0
    %v1483 = vadd.f32 %v1432, %v1482
    %v1484 = vpop.f32.mrf.mxu0
    %v1485 = vadd.f32 %v1434, %v1484
    %v1486 = vpop.f32.mrf.mxu0
    %v1487 = vpop.f32.mrf.mxu0
    %1488 = vdwg.mxu0
    %1489 = vmatprep.subr.bf16.mxu0 %v948
    %1490 = vmatpush1.bf16.msra.mxu0 %v947
    %1491 = vmatprep.subr.bf16.mxu0 %v942
    %1492 = vmatpush1.bf16.msra.mxu0 %v941
    %1493 = vmatprep.subr.bf16.mxu0 %v936
    %1494 = vmatpush1.bf16.msra.mxu0 %v935
    %1495 = vmatprep.subr.bf16.mxu0 %v930
    %1496 = vmatpush1.bf16.msra.mxu0 %v929
    %1497 = vmatprep.subr.bf16.mxu0 %v924
    %1498 = vmatpush1.bf16.msra.mxu0 %v923
    %1499 = vmatprep.subr.bf16.mxu0 %v918
    %1500 = vmatpush1.bf16.msra.mxu0 %v917
    %1501 = vmatprep.subr.bf16.mxu0 %v912
    %1502 = vmatpush1.bf16.msra.mxu0 %v911
    %1503 = vmatprep.subr.bf16.mxu0 %v906
    %1504 = vmatpush1.bf16.msra.mxu0 %v905
    %1505 = vmatprep.subr.bf16.mxu0 %v996
    %1506 = vmatpush2.bf16.msra.mxu0 %v995
    %1507 = vmatprep.subr.bf16.mxu0 %v990
    %1508 = vmatpush2.bf16.msra.mxu0 %v989
    %1509 = vmatprep.subr.bf16.mxu0 %v984
    %1510 = vmatpush2.bf16.msra.mxu0 %v983
    %1511 = vmatprep.subr.bf16.mxu0 %v978
    %1512 = vmatpush2.bf16.msra.mxu0 %v977
    %1513 = vmatprep.subr.bf16.mxu0 %v972
    %1514 = vmatpush2.bf16.msra.mxu0 %v971
    %1515 = vmatprep.subr.bf16.mxu0 %v966
    %1516 = vmatpush2.bf16.msra.mxu0 %v965
    %1517 = vmatprep.subr.bf16.mxu0 %v960
    %1518 = vmatpush2.bf16.msra.mxu0 %v959
    %1519 = vmatprep.subr.bf16.mxu0 %v954
    %1520 = vmatpush2.bf16.msra.mxu0 %v953
    %1521 = vmatprep.mubr.bf16.mxu0 %v126
    %1522 = vmatmul.mubr.bf16.gmra.mxu0 %v125
    %v1523 = vpop.f32.mrf.mxu0
    %v1524 = vadd.f32 0.0, %v1523
    %v1525 = vpop.f32.mrf.mxu0
    %v1526 = vadd.f32 0.0, %v1525
    %v1527 = vpop.f32.mrf.mxu0
    %v1528 = vadd.f32 0.0, %v1527
    %v1529 = vpop.f32.mrf.mxu0
    %v1530 = vadd.f32 0.0, %v1529
    %1531 = vmatprep.mubr.bf16.mxu0 %v130
    %1532 = vmatmul.mubr.bf16.gmra.mxu0 %v129
    %v1533 = vpop.f32.mrf.mxu0
    %v1534 = vadd.f32 0.0, %v1533
    %v1535 = vpop.f32.mrf.mxu0
    %v1536 = vadd.f32 0.0, %v1535
    %v1537 = vpop.f32.mrf.mxu0
    %v1538 = vpop.f32.mrf.mxu0
    %1539 = vdwg.mxu0
    %1540 = vmatprep.subr.bf16.mxu0 %v1044
    %1541 = vmatpush1.bf16.msra.mxu0 %v1043
    %1542 = vmatprep.subr.bf16.mxu0 %v1038
    %1543 = vmatpush1.bf16.msra.mxu0 %v1037
    %1544 = vmatprep.subr.bf16.mxu0 %v1032
    %1545 = vmatpush1.bf16.msra.mxu0 %v1031
    %1546 = vmatprep.subr.bf16.mxu0 %v1026
    %1547 = vmatpush1.bf16.msra.mxu0 %v1025
    %1548 = vmatprep.subr.bf16.mxu0 %v1020
    %1549 = vmatpush1.bf16.msra.mxu0 %v1019
    %1550 = vmatprep.subr.bf16.mxu0 %v1014
    %1551 = vmatpush1.bf16.msra.mxu0 %v1013
    %1552 = vmatprep.subr.bf16.mxu0 %v1008
    %1553 = vmatpush1.bf16.msra.mxu0 %v1007
    %1554 = vmatprep.subr.bf16.mxu0 %v1002
    %1555 = vmatpush1.bf16.msra.mxu0 %v1001
    %1556 = vmatprep.subr.bf16.mxu0 %v1092
    %1557 = vmatpush2.bf16.msra.mxu0 %v1091
    %1558 = vmatprep.subr.bf16.mxu0 %v1086
    %1559 = vmatpush2.bf16.msra.mxu0 %v1085
    %1560 = vmatprep.subr.bf16.mxu0 %v1080
    %1561 = vmatpush2.bf16.msra.mxu0 %v1079
    %1562 = vmatprep.subr.bf16.mxu0 %v1074
    %1563 = vmatpush2.bf16.msra.mxu0 %v1073
    %1564 = vmatprep.subr.bf16.mxu0 %v1068
    %1565 = vmatpush2.bf16.msra.mxu0 %v1067
    %1566 = vmatprep.subr.bf16.mxu0 %v1062
    %1567 = vmatpush2.bf16.msra.mxu0 %v1061
    %1568 = vmatprep.subr.bf16.mxu0 %v1056
    %1569 = vmatpush2.bf16.msra.mxu0 %v1055
    %1570 = vmatprep.subr.bf16.mxu0 %v1050
    %1571 = vmatpush2.bf16.msra.mxu0 %v1049
    %1572 = vmatprep.mubr.bf16.mxu0 %v128
    %1573 = vmatmul.mubr.bf16.gmra.mxu0 %v127
    %v1574 = vpop.f32.mrf.mxu0
    %v1575 = vadd.f32 %v1524, %v1574
    %v1576 = vpop.f32.mrf.mxu0
    %v1577 = vadd.f32 %v1526, %v1576
    %v1578 = vpop.f32.mrf.mxu0
    %v1579 = vadd.f32 %v1528, %v1578
    %v1580 = vpop.f32.mrf.mxu0
    %v1581 = vadd.f32 %v1530, %v1580
    %1582 = vmatprep.mubr.bf16.mxu0 %v132
    %1583 = vmatmul.mubr.bf16.gmra.mxu0 %v131
    %v1584 = vpop.f32.mrf.mxu0
    %v1585 = vadd.f32 %v1534, %v1584
    %v1586 = vpop.f32.mrf.mxu0
    %v1587 = vadd.f32 %v1536, %v1586
    %v1588 = vpop.f32.mrf.mxu0
    %v1589 = vpop.f32.mrf.mxu0
    %1590 = vdwg.mxu0
    %v1591 = vmul.f32 %v1371, %v1371
    %v1592 = vmul.f32 %v1373, %v1373
    %v1593 = vmul.f32 %v1473, %v1473
    %v1594 = vmul.f32 %v1375, %v1375
    %v1595 = vmul.f32 %v1377, %v1377
    %v1596 = vmul.f32 %v1477, %v1477
    %v1597 = vmul.f32 %v1381, %v1381
    %v1598 = vmul.f32 %v1383, %v1383
    %v1599 = vmul.f32 %v1483, %v1483
    %v1600 = vmul.f32 %v1475, %v1475
    %v1601 = vmul.f32 %v1575, %v1575
    %v1602 = vmul.f32 %v1577, %v1577
    %v1603 = vmul.f32 %v1479, %v1479
    %v1604 = vmul.f32 %v1579, %v1579
    %v1605 = vmul.f32 %v1581, %v1581
    %v1606 = vmul.f32 %v1485, %v1485
    %v1607 = vmul.f32 %v1585, %v1585
    %v1608 = vmul.f32 %v1587, %v1587
    %v1609 = vadd.f32 %v1591, %v1600
    %v1610 = vadd.f32 %v1592, %v1601
    %v1611 = vadd.f32 %v1593, %v1602
    %v1612 = vadd.f32 %v1594, %v1603
    %v1613 = vadd.f32 %v1595, %v1604
    %v1614 = vadd.f32 %v1596, %v1605
    %v1615 = vadd.f32 %v1597, %v1606
    %v1616 = vadd.f32 %v1598, %v1607
    %v1617 = vadd.f32 %v1599, %v1608
    %v1618 = vmax.f32 %v1609, 1.1754944e-38
    %v1619 = vmax.f32 %v1610, 1.1754944e-38
    %v1620 = vmax.f32 %v1611, 1.1754944e-38
    %v1621 = vmax.f32 %v1612, 1.1754944e-38
    %v1622 = vmax.f32 %v1613, 1.1754944e-38
    %v1623 = vmax.f32 %v1614, 1.1754944e-38
    %v1624 = vmax.f32 %v1615, 1.1754944e-38
    %v1625 = vmax.f32 %v1616, 1.1754944e-38
    %v1626 = vmax.f32 %v1617, 1.1754944e-38
    %v1627 = vrsqrt.pop %v1618
    %v1628 = vrsqrt.pop %v1619
    %v1629 = vrsqrt.pop %v1620
    %v1630 = vrsqrt.pop %v1621
    %v1631 = vrsqrt.pop %v1622
    %v1632 = vrsqrt.pop %v1623
    %v1633 = vrsqrt.pop %v1624
    %v1634 = vrsqrt.pop %v1625
    %v1635 = vrsqrt.pop %v1626
    %v1636 = vld [vmem:[%s3] sm:$0x7]
    %v1638 = vlaneseq
    %v1639 = vshrl.u32 %v1638, 7
    %v1640 = vsub.s32 0, %v1639
    %v1641 = vrot.slane %v1636, %v1640
    %v1642 = vlaneseq
    %v1643 = vshrl.u32 %v1642, 7
    %v1644 = vsub.s32 1, %v1643
    %v1645 = vrot.slane %v1636, %v1644
    %v1646 = vlaneseq
    %v1647 = vshrl.u32 %v1646, 7
    %v1648 = vsub.s32 2, %v1647
    %v1649 = vrot.slane %v1636, %v1648
    %v1653 = vmul.f32 %v1641, %v1627
    %v1654 = vmul.f32 %v1645, %v1628
    %v1655 = vmul.f32 %v1649, %v1629
    %v1656 = vmul.f32 %v1641, %v1630
    %v1657 = vmul.f32 %v1645, %v1631
    %v1658 = vmul.f32 %v1649, %v1632
    %v1659 = vmul.f32 %v1641, %v1633
    %v1660 = vmul.f32 %v1645, %v1634
    %v1661 = vmul.f32 %v1649, %v1635
    %v1662 = vsub.f32 1.0, %v1653
    %v1663 = vsub.f32 1.0, %v1654
    %v1664 = vsub.f32 1.0, %v1655
    %v1665 = vsub.f32 1.0, %v1656
    %v1666 = vsub.f32 1.0, %v1657
    %v1667 = vsub.f32 1.0, %v1658
    %v1668 = vsub.f32 1.0, %v1659
    %v1669 = vsub.f32 1.0, %v1660
    %v1670 = vsub.f32 1.0, %v1661
    %v1671 = vmax.f32 %v1662, 0.0
    %v1672 = vmax.f32 %v1663, 0.0
    %v1673 = vmax.f32 %v1664, 0.0
    %v1674 = vmax.f32 %v1665, 0.0
    %v1675 = vmax.f32 %v1666, 0.0
    %v1676 = vmax.f32 %v1667, 0.0
    %v1677 = vmax.f32 %v1668, 0.0
    %v1678 = vmax.f32 %v1669, 0.0
    %v1679 = vmax.f32 %v1670, 0.0
    %v1680 = vmul.f32 %v1371, %v1671
    %v1681 = vmul.f32 %v1373, %v1672
    %v1682 = vmul.f32 %v1473, %v1673
    %v1683 = vmul.f32 %v1375, %v1674
    %v1684 = vmul.f32 %v1377, %v1675
    %v1685 = vmul.f32 %v1477, %v1676
    %v1686 = vmul.f32 %v1381, %v1677
    %v1687 = vmul.f32 %v1383, %v1678
    %v1688 = vmul.f32 %v1483, %v1679
    %v1689 = vmul.f32 %v1475, %v1671
    %v1690 = vmul.f32 %v1575, %v1672
    %v1691 = vmul.f32 %v1577, %v1673
    %v1692 = vmul.f32 %v1479, %v1674
    %v1693 = vmul.f32 %v1579, %v1675
    %v1694 = vmul.f32 %v1581, %v1676
    %v1695 = vmul.f32 %v1485, %v1677
    %v1696 = vmul.f32 %v1585, %v1678
    %v1697 = vmul.f32 %v1587, %v1679
    %v1698 = vpack.c.bf16 %v1683, %v1680
    %v1699 = vpack.c.bf16 %v1684, %v1681
    %v1700 = vpack.c.bf16 %v1685, %v1682
    %v1701 = vpack.c.bf16 %v1692, %v1689
    %v1702 = vpack.c.bf16 %v1693, %v1690
    %v1703 = vpack.c.bf16 %v1694, %v1691
    %v1704 = vpack.c.bf16 %v1686, %v1686
    %v1705 = vpack.c.bf16 %v1687, %v1687
    %v1706 = vpack.c.bf16 %v1688, %v1688
    %v1707 = vpack.c.bf16 %v1695, %v1695
    %v1708 = vpack.c.bf16 %v1696, %v1696
    %v1709 = vpack.c.bf16 %v1697, %v1697
    %v1710 = vld [vmem:[#allocation7] sm:$0xff]
    %v1711 = vld [vmem:[#allocation7 + $0x8] sm:$0xff]
    %v1712 = vld [vmem:[#allocation7 + $0x10] sm:$0xff]
    %v1713 = vld [vmem:[#allocation7 + $0x18] sm:$0xff]
    %v1714 = vld [vmem:[#allocation7 + $0x20] sm:$0xff]
    %v1715 = vld [vmem:[#allocation7 + $0x28] sm:$0xff]
    %v1716 = vld [vmem:[#allocation7 + $0x30] sm:$0xff]
    %v1717 = vld [vmem:[#allocation7 + $0x38] sm:$0xff]
    %v1718 = vld [vmem:[#allocation7 + $0x40] sm:$0xff]
    %v1719 = vld [vmem:[#allocation7 + $0x48] sm:$0xff]
    %v1720 = vld [vmem:[#allocation7 + $0x50] sm:$0xff]
    %v1721 = vld [vmem:[#allocation7 + $0x58] sm:$0xff]
    %v1722 = vld [vmem:[#allocation7 + $0x60] sm:$0xff]
    %v1723 = vld [vmem:[#allocation7 + $0x68] sm:$0xff]
    %v1724 = vld [vmem:[#allocation7 + $0x70] sm:$0xff]
    %v1725 = vld [vmem:[#allocation7 + $0x78] sm:$0xff]
    %v1726 = vld [vmem:[#allocation7 + $0x80] sm:$0xff]
    %v1727 = vld [vmem:[#allocation7 + $0x88] sm:$0xff]
    %v1728 = vld [vmem:[#allocation7 + $0x90] sm:$0xff]
    %v1729 = vld [vmem:[#allocation7 + $0x98] sm:$0xff]
    %v1730 = vld [vmem:[#allocation7 + $0xa0] sm:$0xff]
    %v1731 = vld [vmem:[#allocation7 + $0xa8] sm:$0xff]
    %v1732 = vld [vmem:[#allocation7 + $0xb0] sm:$0xff]
    %v1733 = vld [vmem:[#allocation7 + $0xb8] sm:$0xff]
    %v1734 = vld [vmem:[#allocation7 + $0xc0] sm:$0xff]
    %v1735 = vld [vmem:[#allocation7 + $0xc8] sm:$0xff]
    %v1736 = vld [vmem:[#allocation7 + $0xd0] sm:$0xff]
    %v1737 = vld [vmem:[#allocation7 + $0xd8] sm:$0xff]
    %v1738 = vld [vmem:[#allocation7 + $0xe0] sm:$0xff]
    %v1739 = vld [vmem:[#allocation7 + $0xe8] sm:$0xff]
    %v1740 = vld [vmem:[#allocation7 + $0xf0] sm:$0xff]
    %v1741 = vld [vmem:[#allocation7 + $0xf8] sm:$0xff]
    %v1742 = vld [vmem:[#allocation7 + $0x100] sm:$0xff]
    %v1743 = vld [vmem:[#allocation7 + $0x108] sm:$0xff]
    %v1744 = vld [vmem:[#allocation7 + $0x110] sm:$0xff]
    %v1745 = vld [vmem:[#allocation7 + $0x118] sm:$0xff]
    %v1746 = vld [vmem:[#allocation7 + $0x120] sm:$0xff]
    %v1747 = vld [vmem:[#allocation7 + $0x128] sm:$0xff]
    %v1748 = vld [vmem:[#allocation7 + $0x130] sm:$0xff]
    %v1749 = vld [vmem:[#allocation7 + $0x138] sm:$0xff]
    %v1750 = vld [vmem:[#allocation7 + $0x140] sm:$0xff]
    %v1751 = vld [vmem:[#allocation7 + $0x148] sm:$0xff]
    %v1752 = vld [vmem:[#allocation7 + $0x150] sm:$0xff]
    %v1753 = vld [vmem:[#allocation7 + $0x158] sm:$0xff]
    %v1754 = vld [vmem:[#allocation7 + $0x160] sm:$0xff]
    %v1755 = vld [vmem:[#allocation7 + $0x168] sm:$0xff]
    %v1756 = vld [vmem:[#allocation7 + $0x170] sm:$0xff]
    %v1757 = vld [vmem:[#allocation7 + $0x178] sm:$0xff]
    %v1758 = vld [vmem:[#allocation7 + $0x180] sm:$0xff]
    %v1759 = vld [vmem:[#allocation7 + $0x188] sm:$0xff]
    %v1760 = vld [vmem:[#allocation7 + $0x190] sm:$0xff]
    %v1761 = vld [vmem:[#allocation7 + $0x198] sm:$0xff]
    %v1762 = vld [vmem:[#allocation7 + $0x1a0] sm:$0xff]
    %v1763 = vld [vmem:[#allocation7 + $0x1a8] sm:$0xff]
    %v1764 = vld [vmem:[#allocation7 + $0x1b0] sm:$0xff]
    %v1765 = vld [vmem:[#allocation7 + $0x1b8] sm:$0xff]
    %v1766 = vld [vmem:[#allocation7 + $0x1c0] sm:$0xff]
    %v1767 = vld [vmem:[#allocation7 + $0x1c8] sm:$0xff]
    %v1768 = vld [vmem:[#allocation7 + $0x1d0] sm:$0xff]
    %v1769 = vld [vmem:[#allocation7 + $0x1d8] sm:$0xff]
    %v1770 = vld [vmem:[#allocation7 + $0x1e0] sm:$0xff]
    %v1771 = vld [vmem:[#allocation7 + $0x1e8] sm:$0xff]
    %v1772 = vld [vmem:[#allocation7 + $0x1f0] sm:$0xff]
    %v1773 = vld [vmem:[#allocation7 + $0x1f8] sm:$0xff]
    %v1774 = vld [vmem:[#allocation7 + $0x200] sm:$0xff]
    %v1775 = vld [vmem:[#allocation7 + $0x208] sm:$0xff]
    %v1776 = vld [vmem:[#allocation7 + $0x210] sm:$0xff]
    %v1777 = vld [vmem:[#allocation7 + $0x218] sm:$0xff]
    %v1778 = vld [vmem:[#allocation7 + $0x220] sm:$0xff]
    %v1779 = vld [vmem:[#allocation7 + $0x228] sm:$0xff]
    %v1780 = vld [vmem:[#allocation7 + $0x230] sm:$0xff]
    %v1781 = vld [vmem:[#allocation7 + $0x238] sm:$0xff]
    %v1782 = vld [vmem:[#allocation7 + $0x240] sm:$0xff]
    %v1783 = vld [vmem:[#allocation7 + $0x248] sm:$0xff]
    %v1784 = vld [vmem:[#allocation7 + $0x250] sm:$0xff]
    %v1785 = vld [vmem:[#allocation7 + $0x258] sm:$0xff]
    %v1786 = vld [vmem:[#allocation7 + $0x260] sm:$0xff]
    %v1787 = vld [vmem:[#allocation7 + $0x268] sm:$0xff]
    %v1788 = vld [vmem:[#allocation7 + $0x270] sm:$0xff]
    %v1789 = vld [vmem:[#allocation7 + $0x278] sm:$0xff]
    %v1790 = vld [vmem:[#allocation7 + $0x280] sm:$0xff]
    %v1791 = vld [vmem:[#allocation7 + $0x288] sm:$0xff]
    %v1792 = vld [vmem:[#allocation7 + $0x290] sm:$0xff]
    %v1793 = vld [vmem:[#allocation7 + $0x298] sm:$0xff]
    %v1794 = vld [vmem:[#allocation7 + $0x2a0] sm:$0xff]
    %v1795 = vld [vmem:[#allocation7 + $0x2a8] sm:$0xff]
    %v1796 = vld [vmem:[#allocation7 + $0x2b0] sm:$0xff]
    %v1797 = vld [vmem:[#allocation7 + $0x2b8] sm:$0xff]
    %v1798 = vld [vmem:[#allocation7 + $0x2c0] sm:$0xff]
    %v1799 = vld [vmem:[#allocation7 + $0x2c8] sm:$0xff]
    %v1800 = vld [vmem:[#allocation7 + $0x2d0] sm:$0xff]
    %v1801 = vld [vmem:[#allocation7 + $0x2d8] sm:$0xff]
    %v1802 = vld [vmem:[#allocation7 + $0x2e0] sm:$0xff]
    %v1803 = vld [vmem:[#allocation7 + $0x2e8] sm:$0xff]
    %v1804 = vld [vmem:[#allocation7 + $0x2f0] sm:$0xff]
    %v1805 = vld [vmem:[#allocation7 + $0x2f8] sm:$0xff]
    %v1806 = vld [vmem:[#allocation7 + $0x300] sm:$0xff]
    %v1807 = vld [vmem:[#allocation7 + $0x308] sm:$0xff]
    %v1808 = vld [vmem:[#allocation7 + $0x310] sm:$0xff]
    %v1809 = vld [vmem:[#allocation7 + $0x318] sm:$0xff]
    %v1810 = vld [vmem:[#allocation7 + $0x320] sm:$0xff]
    %v1811 = vld [vmem:[#allocation7 + $0x328] sm:$0xff]
    %v1812 = vld [vmem:[#allocation7 + $0x330] sm:$0xff]
    %v1813 = vld [vmem:[#allocation7 + $0x338] sm:$0xff]
    %v1814 = vld [vmem:[#allocation7 + $0x340] sm:$0xff]
    %v1815 = vld [vmem:[#allocation7 + $0x348] sm:$0xff]
    %v1816 = vld [vmem:[#allocation7 + $0x350] sm:$0xff]
    %v1817 = vld [vmem:[#allocation7 + $0x358] sm:$0xff]
    %v1818 = vld [vmem:[#allocation7 + $0x360] sm:$0xff]
    %v1819 = vld [vmem:[#allocation7 + $0x368] sm:$0xff]
    %v1820 = vld [vmem:[#allocation7 + $0x370] sm:$0xff]
    %v1821 = vld [vmem:[#allocation7 + $0x378] sm:$0xff]
    %v1822 = vld [vmem:[#allocation7 + $0x380] sm:$0xff]
    %v1823 = vld [vmem:[#allocation7 + $0x388] sm:$0xff]
    %v1824 = vld [vmem:[#allocation7 + $0x390] sm:$0xff]
    %v1825 = vld [vmem:[#allocation7 + $0x398] sm:$0xff]
    %v1826 = vld [vmem:[#allocation7 + $0x3a0] sm:$0xff]
    %v1827 = vld [vmem:[#allocation7 + $0x3a8] sm:$0xff]
    %v1828 = vld [vmem:[#allocation7 + $0x3b0] sm:$0xff]
    %v1829 = vld [vmem:[#allocation7 + $0x3b8] sm:$0xff]
    %v1830 = vld [vmem:[#allocation7 + $0x3c0] sm:$0xff]
    %v1831 = vld [vmem:[#allocation7 + $0x3c8] sm:$0xff]
    %v1832 = vld [vmem:[#allocation7 + $0x3d0] sm:$0xff]
    %v1833 = vld [vmem:[#allocation7 + $0x3d8] sm:$0xff]
    %v1834 = vld [vmem:[#allocation7 + $0x3e0] sm:$0xff]
    %v1835 = vld [vmem:[#allocation7 + $0x3e8] sm:$0xff]
    %v1836 = vld [vmem:[#allocation7 + $0x3f0] sm:$0xff]
    %v1837 = vld [vmem:[#allocation7 + $0x3f8] sm:$0xff]
    %v1838 = vld [vmem:[#allocation7 + $0x400] sm:$0xff]
    %v1839 = vld [vmem:[#allocation7 + $0x408] sm:$0xff]
    %v1840 = vld [vmem:[#allocation7 + $0x410] sm:$0xff]
    %v1841 = vld [vmem:[#allocation7 + $0x418] sm:$0xff]
    %v1842 = vld [vmem:[#allocation7 + $0x420] sm:$0xff]
    %v1843 = vld [vmem:[#allocation7 + $0x428] sm:$0xff]
    %v1844 = vld [vmem:[#allocation7 + $0x430] sm:$0xff]
    %v1845 = vld [vmem:[#allocation7 + $0x438] sm:$0xff]
    %v1846 = vld [vmem:[#allocation7 + $0x440] sm:$0xff]
    %v1847 = vld [vmem:[#allocation7 + $0x448] sm:$0xff]
    %v1848 = vld [vmem:[#allocation7 + $0x450] sm:$0xff]
    %v1849 = vld [vmem:[#allocation7 + $0x458] sm:$0xff]
    %v1850 = vld [vmem:[#allocation7 + $0x460] sm:$0xff]
    %v1851 = vld [vmem:[#allocation7 + $0x468] sm:$0xff]
    %v1852 = vld [vmem:[#allocation7 + $0x470] sm:$0xff]
    %v1853 = vld [vmem:[#allocation7 + $0x478] sm:$0xff]
    %v1854 = vld [vmem:[#allocation7 + $0x480] sm:$0xff]
    %v1855 = vld [vmem:[#allocation7 + $0x488] sm:$0xff]
    %v1856 = vld [vmem:[#allocation7 + $0x490] sm:$0xff]
    %v1857 = vld [vmem:[#allocation7 + $0x498] sm:$0xff]
    %v1858 = vld [vmem:[#allocation7 + $0x4a0] sm:$0xff]
    %v1859 = vld [vmem:[#allocation7 + $0x4a8] sm:$0xff]
    %v1860 = vld [vmem:[#allocation7 + $0x4b0] sm:$0xff]
    %v1861 = vld [vmem:[#allocation7 + $0x4b8] sm:$0xff]
    %v1862 = vld [vmem:[#allocation7 + $0x4c0] sm:$0xff]
    %v1863 = vld [vmem:[#allocation7 + $0x4c8] sm:$0xff]
    %v1864 = vld [vmem:[#allocation7 + $0x4d0] sm:$0xff]
    %v1865 = vld [vmem:[#allocation7 + $0x4d8] sm:$0xff]
    %v1866 = vld [vmem:[#allocation7 + $0x4e0] sm:$0xff]
    %v1867 = vld [vmem:[#allocation7 + $0x4e8] sm:$0xff]
    %v1868 = vld [vmem:[#allocation7 + $0x4f0] sm:$0xff]
    %v1869 = vld [vmem:[#allocation7 + $0x4f8] sm:$0xff]
    %v1870 = vld [vmem:[#allocation7 + $0x500] sm:$0xff]
    %v1871 = vld [vmem:[#allocation7 + $0x508] sm:$0xff]
    %v1872 = vld [vmem:[#allocation7 + $0x510] sm:$0xff]
    %v1873 = vld [vmem:[#allocation7 + $0x518] sm:$0xff]
    %v1874 = vld [vmem:[#allocation7 + $0x520] sm:$0xff]
    %v1875 = vld [vmem:[#allocation7 + $0x528] sm:$0xff]
    %v1876 = vld [vmem:[#allocation7 + $0x530] sm:$0xff]
    %v1877 = vld [vmem:[#allocation7 + $0x538] sm:$0xff]
    %v1878 = vld [vmem:[#allocation7 + $0x540] sm:$0xff]
    %v1879 = vld [vmem:[#allocation7 + $0x548] sm:$0xff]
    %v1880 = vld [vmem:[#allocation7 + $0x550] sm:$0xff]
    %v1881 = vld [vmem:[#allocation7 + $0x558] sm:$0xff]
    %v1882 = vld [vmem:[#allocation7 + $0x560] sm:$0xff]
    %v1883 = vld [vmem:[#allocation7 + $0x568] sm:$0xff]
    %v1884 = vld [vmem:[#allocation7 + $0x570] sm:$0xff]
    %v1885 = vld [vmem:[#allocation7 + $0x578] sm:$0xff]
    %v1886 = vld [vmem:[#allocation7 + $0x580] sm:$0xff]
    %v1887 = vld [vmem:[#allocation7 + $0x588] sm:$0xff]
    %v1888 = vld [vmem:[#allocation7 + $0x590] sm:$0xff]
    %v1889 = vld [vmem:[#allocation7 + $0x598] sm:$0xff]
    %v1890 = vld [vmem:[#allocation7 + $0x5a0] sm:$0xff]
    %v1891 = vld [vmem:[#allocation7 + $0x5a8] sm:$0xff]
    %v1892 = vld [vmem:[#allocation7 + $0x5b0] sm:$0xff]
    %v1893 = vld [vmem:[#allocation7 + $0x5b8] sm:$0xff]
    %v1894 = vld [vmem:[#allocation7 + $0x5c0] sm:$0xff]
    %v1895 = vld [vmem:[#allocation7 + $0x5c8] sm:$0xff]
    %v1896 = vld [vmem:[#allocation7 + $0x5d0] sm:$0xff]
    %v1897 = vld [vmem:[#allocation7 + $0x5d8] sm:$0xff]
    %v1898 = vld [vmem:[#allocation7 + $0x5e0] sm:$0xff]
    %v1899 = vld [vmem:[#allocation7 + $0x5e8] sm:$0xff]
    %v1900 = vld [vmem:[#allocation7 + $0x5f0] sm:$0xff]
    %v1901 = vld [vmem:[#allocation7 + $0x5f8] sm:$0xff]
    %v2094 = vunpack.c.l.b16 %v1710
    %v2095 = vunpack.c.h.b16 %v1710
    %v2096 = vunpack.c.l.b16 %v1711
    %v2097 = vunpack.c.h.b16 %v1711
    %v2098 = vunpack.c.l.b16 %v1712
    %v2099 = vunpack.c.h.b16 %v1712
    %v2100 = vunpack.c.l.b16 %v1713
    %v2101 = vunpack.c.h.b16 %v1713
    %v2102 = vunpack.c.l.b16 %v1714
    %v2103 = vunpack.c.h.b16 %v1714
    %v2104 = vunpack.c.l.b16 %v1715
    %v2105 = vunpack.c.h.b16 %v1715
    %v2106 = vunpack.c.l.b16 %v1716
    %v2107 = vunpack.c.h.b16 %v1716
    %v2108 = vunpack.c.l.b16 %v1717
    %v2109 = vunpack.c.h.b16 %v1717
    %v2110 = vunpack.c.l.b16 %v1718
    %v2111 = vunpack.c.h.b16 %v1718
    %v2112 = vunpack.c.l.b16 %v1719
    %v2113 = vunpack.c.h.b16 %v1719
    %v2114 = vunpack.c.l.b16 %v1720
    %v2115 = vunpack.c.h.b16 %v1720
    %v2116 = vunpack.c.l.b16 %v1721
    %v2117 = vunpack.c.h.b16 %v1721
    %v2118 = vunpack.c.l.b16 %v1722
    %v2119 = vunpack.c.h.b16 %v1722
    %v2120 = vunpack.c.l.b16 %v1723
    %v2121 = vunpack.c.h.b16 %v1723
    %v2122 = vunpack.c.l.b16 %v1724
    %v2123 = vunpack.c.h.b16 %v1724
    %v2124 = vunpack.c.l.b16 %v1725
    %v2125 = vunpack.c.h.b16 %v1725
    %v2126 = vunpack.c.l.b16 %v1726
    %v2127 = vunpack.c.h.b16 %v1726
    %v2128 = vunpack.c.l.b16 %v1727
    %v2129 = vunpack.c.h.b16 %v1727
    %v2130 = vunpack.c.l.b16 %v1728
    %v2131 = vunpack.c.h.b16 %v1728
    %v2132 = vunpack.c.l.b16 %v1729
    %v2133 = vunpack.c.h.b16 %v1729
    %v2134 = vunpack.c.l.b16 %v1730
    %v2135 = vunpack.c.h.b16 %v1730
    %v2136 = vunpack.c.l.b16 %v1731
    %v2137 = vunpack.c.h.b16 %v1731
    %v2138 = vunpack.c.l.b16 %v1732
    %v2139 = vunpack.c.h.b16 %v1732
    %v2140 = vunpack.c.l.b16 %v1733
    %v2141 = vunpack.c.h.b16 %v1733
    %v2142 = vunpack.c.l.b16 %v1734
    %v2143 = vunpack.c.h.b16 %v1734
    %v2144 = vunpack.c.l.b16 %v1735
    %v2145 = vunpack.c.h.b16 %v1735
    %v2146 = vunpack.c.l.b16 %v1736
    %v2147 = vunpack.c.h.b16 %v1736
    %v2148 = vunpack.c.l.b16 %v1737
    %v2149 = vunpack.c.h.b16 %v1737
    %v2150 = vunpack.c.l.b16 %v1738
    %v2151 = vunpack.c.h.b16 %v1738
    %v2152 = vunpack.c.l.b16 %v1739
    %v2153 = vunpack.c.h.b16 %v1739
    %v2154 = vunpack.c.l.b16 %v1740
    %v2155 = vunpack.c.h.b16 %v1740
    %v2156 = vunpack.c.l.b16 %v1741
    %v2157 = vunpack.c.h.b16 %v1741
    %v2158 = vunpack.c.l.b16 %v1742
    %v2159 = vunpack.c.h.b16 %v1742
    %v2160 = vunpack.c.l.b16 %v1743
    %v2161 = vunpack.c.h.b16 %v1743
    %v2162 = vunpack.c.l.b16 %v1744
    %v2163 = vunpack.c.h.b16 %v1744
    %v2164 = vunpack.c.l.b16 %v1745
    %v2165 = vunpack.c.h.b16 %v1745
    %v2166 = vunpack.c.l.b16 %v1746
    %v2167 = vunpack.c.h.b16 %v1746
    %v2168 = vunpack.c.l.b16 %v1747
    %v2169 = vunpack.c.h.b16 %v1747
    %v2170 = vunpack.c.l.b16 %v1748
    %v2171 = vunpack.c.h.b16 %v1748
    %v2172 = vunpack.c.l.b16 %v1749
    %v2173 = vunpack.c.h.b16 %v1749
    %v2174 = vunpack.c.l.b16 %v1750
    %v2175 = vunpack.c.h.b16 %v1750
    %v2176 = vunpack.c.l.b16 %v1751
    %v2177 = vunpack.c.h.b16 %v1751
    %v2178 = vunpack.c.l.b16 %v1752
    %v2179 = vunpack.c.h.b16 %v1752
    %v2180 = vunpack.c.l.b16 %v1753
    %v2181 = vunpack.c.h.b16 %v1753
    %v2182 = vunpack.c.l.b16 %v1754
    %v2183 = vunpack.c.h.b16 %v1754
    %v2184 = vunpack.c.l.b16 %v1755
    %v2185 = vunpack.c.h.b16 %v1755
    %v2186 = vunpack.c.l.b16 %v1756
    %v2187 = vunpack.c.h.b16 %v1756
    %v2188 = vunpack.c.l.b16 %v1757
    %v2189 = vunpack.c.h.b16 %v1757
    %v2190 = vunpack.c.l.b16 %v1758
    %v2191 = vunpack.c.h.b16 %v1758
    %v2192 = vunpack.c.l.b16 %v1759
    %v2193 = vunpack.c.h.b16 %v1759
    %v2194 = vunpack.c.l.b16 %v1760
    %v2195 = vunpack.c.h.b16 %v1760
    %v2196 = vunpack.c.l.b16 %v1761
    %v2197 = vunpack.c.h.b16 %v1761
    %v2198 = vunpack.c.l.b16 %v1762
    %v2199 = vunpack.c.h.b16 %v1762
    %v2200 = vunpack.c.l.b16 %v1763
    %v2201 = vunpack.c.h.b16 %v1763
    %v2202 = vunpack.c.l.b16 %v1764
    %v2203 = vunpack.c.h.b16 %v1764
    %v2204 = vunpack.c.l.b16 %v1765
    %v2205 = vunpack.c.h.b16 %v1765
    %v2206 = vunpack.c.l.b16 %v1766
    %v2207 = vunpack.c.h.b16 %v1766
    %v2208 = vunpack.c.l.b16 %v1767
    %v2209 = vunpack.c.h.b16 %v1767
    %v2210 = vunpack.c.l.b16 %v1768
    %v2211 = vunpack.c.h.b16 %v1768
    %v2212 = vunpack.c.l.b16 %v1769
    %v2213 = vunpack.c.h.b16 %v1769
    %v2214 = vunpack.c.l.b16 %v1770
    %v2215 = vunpack.c.h.b16 %v1770
    %v2216 = vunpack.c.l.b16 %v1771
    %v2217 = vunpack.c.h.b16 %v1771
    %v2218 = vunpack.c.l.b16 %v1772
    %v2219 = vunpack.c.h.b16 %v1772
    %v2220 = vunpack.c.l.b16 %v1773
    %v2221 = vunpack.c.h.b16 %v1773
    %v2222 = vunpack.c.l.b16 %v1774
    %v2223 = vunpack.c.h.b16 %v1774
    %v2224 = vunpack.c.l.b16 %v1775
    %v2225 = vunpack.c.h.b16 %v1775
    %v2226 = vunpack.c.l.b16 %v1776
    %v2227 = vunpack.c.h.b16 %v1776
    %v2228 = vunpack.c.l.b16 %v1777
    %v2229 = vunpack.c.h.b16 %v1777
    %v2230 = vunpack.c.l.b16 %v1778
    %v2231 = vunpack.c.h.b16 %v1778
    %v2232 = vunpack.c.l.b16 %v1779
    %v2233 = vunpack.c.h.b16 %v1779
    %v2234 = vunpack.c.l.b16 %v1780
    %v2235 = vunpack.c.h.b16 %v1780
    %v2236 = vunpack.c.l.b16 %v1781
    %v2237 = vunpack.c.h.b16 %v1781
    %v2238 = vunpack.c.l.b16 %v1782
    %v2239 = vunpack.c.h.b16 %v1782
    %v2240 = vunpack.c.l.b16 %v1783
    %v2241 = vunpack.c.h.b16 %v1783
    %v2242 = vunpack.c.l.b16 %v1784
    %v2243 = vunpack.c.h.b16 %v1784
    %v2244 = vunpack.c.l.b16 %v1785
    %v2245 = vunpack.c.h.b16 %v1785
    %v2246 = vunpack.c.l.b16 %v1786
    %v2247 = vunpack.c.h.b16 %v1786
    %v2248 = vunpack.c.l.b16 %v1787
    %v2249 = vunpack.c.h.b16 %v1787
    %v2250 = vunpack.c.l.b16 %v1788
    %v2251 = vunpack.c.h.b16 %v1788
    %v2252 = vunpack.c.l.b16 %v1789
    %v2253 = vunpack.c.h.b16 %v1789
    %v2254 = vunpack.c.l.b16 %v1790
    %v2255 = vunpack.c.h.b16 %v1790
    %v2256 = vunpack.c.l.b16 %v1791
    %v2257 = vunpack.c.h.b16 %v1791
    %v2258 = vunpack.c.l.b16 %v1792
    %v2259 = vunpack.c.h.b16 %v1792
    %v2260 = vunpack.c.l.b16 %v1793
    %v2261 = vunpack.c.h.b16 %v1793
    %v2262 = vunpack.c.l.b16 %v1794
    %v2263 = vunpack.c.h.b16 %v1794
    %v2264 = vunpack.c.l.b16 %v1795
    %v2265 = vunpack.c.h.b16 %v1795
    %v2266 = vunpack.c.l.b16 %v1796
    %v2267 = vunpack.c.h.b16 %v1796
    %v2268 = vunpack.c.l.b16 %v1797
    %v2269 = vunpack.c.h.b16 %v1797
    %v2270 = vunpack.c.l.b16 %v1798
    %v2271 = vunpack.c.h.b16 %v1798
    %v2272 = vunpack.c.l.b16 %v1799
    %v2273 = vunpack.c.h.b16 %v1799
    %v2274 = vunpack.c.l.b16 %v1800
    %v2275 = vunpack.c.h.b16 %v1800
    %v2276 = vunpack.c.l.b16 %v1801
    %v2277 = vunpack.c.h.b16 %v1801
    %v2278 = vunpack.c.l.b16 %v1802
    %v2279 = vunpack.c.h.b16 %v1802
    %v2280 = vunpack.c.l.b16 %v1803
    %v2281 = vunpack.c.h.b16 %v1803
    %v2282 = vunpack.c.l.b16 %v1804
    %v2283 = vunpack.c.h.b16 %v1804
    %v2284 = vunpack.c.l.b16 %v1805
    %v2285 = vunpack.c.h.b16 %v1805
    %v2286 = vunpack.c.l.b16 %v1806
    %v2287 = vunpack.c.h.b16 %v1806
    %v2288 = vunpack.c.l.b16 %v1807
    %v2289 = vunpack.c.h.b16 %v1807
    %v2290 = vunpack.c.l.b16 %v1808
    %v2291 = vunpack.c.h.b16 %v1808
    %v2292 = vunpack.c.l.b16 %v1809
    %v2293 = vunpack.c.h.b16 %v1809
    %v2294 = vunpack.c.l.b16 %v1810
    %v2295 = vunpack.c.h.b16 %v1810
    %v2296 = vunpack.c.l.b16 %v1811
    %v2297 = vunpack.c.h.b16 %v1811
    %v2298 = vunpack.c.l.b16 %v1812
    %v2299 = vunpack.c.h.b16 %v1812
    %v2300 = vunpack.c.l.b16 %v1813
    %v2301 = vunpack.c.h.b16 %v1813
    %v2302 = vunpack.c.l.b16 %v1814
    %v2303 = vunpack.c.h.b16 %v1814
    %v2304 = vunpack.c.l.b16 %v1815
    %v2305 = vunpack.c.h.b16 %v1815
    %v2306 = vunpack.c.l.b16 %v1816
    %v2307 = vunpack.c.h.b16 %v1816
    %v2308 = vunpack.c.l.b16 %v1817
    %v2309 = vunpack.c.h.b16 %v1817
    %v2310 = vunpack.c.l.b16 %v1818
    %v2311 = vunpack.c.h.b16 %v1818
    %v2312 = vunpack.c.l.b16 %v1819
    %v2313 = vunpack.c.h.b16 %v1819
    %v2314 = vunpack.c.l.b16 %v1820
    %v2315 = vunpack.c.h.b16 %v1820
    %v2316 = vunpack.c.l.b16 %v1821
    %v2317 = vunpack.c.h.b16 %v1821
    %v2318 = vunpack.c.l.b16 %v1822
    %v2319 = vunpack.c.h.b16 %v1822
    %v2320 = vunpack.c.l.b16 %v1823
    %v2321 = vunpack.c.h.b16 %v1823
    %v2322 = vunpack.c.l.b16 %v1824
    %v2323 = vunpack.c.h.b16 %v1824
    %v2324 = vunpack.c.l.b16 %v1825
    %v2325 = vunpack.c.h.b16 %v1825
    %v2326 = vunpack.c.l.b16 %v1826
    %v2327 = vunpack.c.h.b16 %v1826
    %v2328 = vunpack.c.l.b16 %v1827
    %v2329 = vunpack.c.h.b16 %v1827
    %v2330 = vunpack.c.l.b16 %v1828
    %v2331 = vunpack.c.h.b16 %v1828
    %v2332 = vunpack.c.l.b16 %v1829
    %v2333 = vunpack.c.h.b16 %v1829
    %v2334 = vunpack.c.l.b16 %v1830
    %v2335 = vunpack.c.h.b16 %v1830
    %v2336 = vunpack.c.l.b16 %v1831
    %v2337 = vunpack.c.h.b16 %v1831
    %v2338 = vunpack.c.l.b16 %v1832
    %v2339 = vunpack.c.h.b16 %v1832
    %v2340 = vunpack.c.l.b16 %v1833
    %v2341 = vunpack.c.h.b16 %v1833
    %v2342 = vunpack.c.l.b16 %v1834
    %v2343 = vunpack.c.h.b16 %v1834
    %v2344 = vunpack.c.l.b16 %v1835
    %v2345 = vunpack.c.h.b16 %v1835
    %v2346 = vunpack.c.l.b16 %v1836
    %v2347 = vunpack.c.h.b16 %v1836
    %v2348 = vunpack.c.l.b16 %v1837
    %v2349 = vunpack.c.h.b16 %v1837
    %v2350 = vunpack.c.l.b16 %v1838
    %v2351 = vunpack.c.h.b16 %v1838
    %v2352 = vunpack.c.l.b16 %v1839
    %v2353 = vunpack.c.h.b16 %v1839
    %v2354 = vunpack.c.l.b16 %v1840
    %v2355 = vunpack.c.h.b16 %v1840
    %v2356 = vunpack.c.l.b16 %v1841
    %v2357 = vunpack.c.h.b16 %v1841
    %v2358 = vunpack.c.l.b16 %v1842
    %v2359 = vunpack.c.h.b16 %v1842
    %v2360 = vunpack.c.l.b16 %v1843
    %v2361 = vunpack.c.h.b16 %v1843
    %v2362 = vunpack.c.l.b16 %v1844
    %v2363 = vunpack.c.h.b16 %v1844
    %v2364 = vunpack.c.l.b16 %v1845
    %v2365 = vunpack.c.h.b16 %v1845
    %v2366 = vunpack.c.l.b16 %v1846
    %v2367 = vunpack.c.h.b16 %v1846
    %v2368 = vunpack.c.l.b16 %v1847
    %v2369 = vunpack.c.h.b16 %v1847
    %v2370 = vunpack.c.l.b16 %v1848
    %v2371 = vunpack.c.h.b16 %v1848
    %v2372 = vunpack.c.l.b16 %v1849
    %v2373 = vunpack.c.h.b16 %v1849
    %v2374 = vunpack.c.l.b16 %v1850
    %v2375 = vunpack.c.h.b16 %v1850
    %v2376 = vunpack.c.l.b16 %v1851
    %v2377 = vunpack.c.h.b16 %v1851
    %v2378 = vunpack.c.l.b16 %v1852
    %v2379 = vunpack.c.h.b16 %v1852
    %v2380 = vunpack.c.l.b16 %v1853
    %v2381 = vunpack.c.h.b16 %v1853
    %v2382 = vunpack.c.l.b16 %v1854
    %v2383 = vunpack.c.h.b16 %v1854
    %v2384 = vunpack.c.l.b16 %v1855
    %v2385 = vunpack.c.h.b16 %v1855
    %v2386 = vunpack.c.l.b16 %v1856
    %v2387 = vunpack.c.h.b16 %v1856
    %v2388 = vunpack.c.l.b16 %v1857
    %v2389 = vunpack.c.h.b16 %v1857
    %v2390 = vunpack.c.l.b16 %v1858
    %v2391 = vunpack.c.h.b16 %v1858
    %v2392 = vunpack.c.l.b16 %v1859
    %v2393 = vunpack.c.h.b16 %v1859
    %v2394 = vunpack.c.l.b16 %v1860
    %v2395 = vunpack.c.h.b16 %v1860
    %v2396 = vunpack.c.l.b16 %v1861
    %v2397 = vunpack.c.h.b16 %v1861
    %v2398 = vunpack.c.l.b16 %v1862
    %v2399 = vunpack.c.h.b16 %v1862
    %v2400 = vunpack.c.l.b16 %v1863
    %v2401 = vunpack.c.h.b16 %v1863
    %v2402 = vunpack.c.l.b16 %v1864
    %v2403 = vunpack.c.h.b16 %v1864
    %v2404 = vunpack.c.l.b16 %v1865
    %v2405 = vunpack.c.h.b16 %v1865
    %v2406 = vunpack.c.l.b16 %v1866
    %v2407 = vunpack.c.h.b16 %v1866
    %v2408 = vunpack.c.l.b16 %v1867
    %v2409 = vunpack.c.h.b16 %v1867
    %v2410 = vunpack.c.l.b16 %v1868
    %v2411 = vunpack.c.h.b16 %v1868
    %v2412 = vunpack.c.l.b16 %v1869
    %v2413 = vunpack.c.h.b16 %v1869
    %v2414 = vunpack.c.l.b16 %v1870
    %v2415 = vunpack.c.h.b16 %v1870
    %v2416 = vunpack.c.l.b16 %v1871
    %v2417 = vunpack.c.h.b16 %v1871
    %v2418 = vunpack.c.l.b16 %v1872
    %v2419 = vunpack.c.h.b16 %v1872
    %v2420 = vunpack.c.l.b16 %v1873
    %v2421 = vunpack.c.h.b16 %v1873
    %v2422 = vunpack.c.l.b16 %v1874
    %v2423 = vunpack.c.h.b16 %v1874
    %v2424 = vunpack.c.l.b16 %v1875
    %v2425 = vunpack.c.h.b16 %v1875
    %v2426 = vunpack.c.l.b16 %v1876
    %v2427 = vunpack.c.h.b16 %v1876
    %v2428 = vunpack.c.l.b16 %v1877
    %v2429 = vunpack.c.h.b16 %v1877
    %v2430 = vunpack.c.l.b16 %v1878
    %v2431 = vunpack.c.h.b16 %v1878
    %v2432 = vunpack.c.l.b16 %v1879
    %v2433 = vunpack.c.h.b16 %v1879
    %v2434 = vunpack.c.l.b16 %v1880
    %v2435 = vunpack.c.h.b16 %v1880
    %v2436 = vunpack.c.l.b16 %v1881
    %v2437 = vunpack.c.h.b16 %v1881
    %v2438 = vunpack.c.l.b16 %v1882
    %v2439 = vunpack.c.h.b16 %v1882
    %v2440 = vunpack.c.l.b16 %v1883
    %v2441 = vunpack.c.h.b16 %v1883
    %v2442 = vunpack.c.l.b16 %v1884
    %v2443 = vunpack.c.h.b16 %v1884
    %v2444 = vunpack.c.l.b16 %v1885
    %v2445 = vunpack.c.h.b16 %v1885
    %v2446 = vunpack.c.l.b16 %v1886
    %v2447 = vunpack.c.h.b16 %v1886
    %v2448 = vunpack.c.l.b16 %v1887
    %v2449 = vunpack.c.h.b16 %v1887
    %v2450 = vunpack.c.l.b16 %v1888
    %v2451 = vunpack.c.h.b16 %v1888
    %v2452 = vunpack.c.l.b16 %v1889
    %v2453 = vunpack.c.h.b16 %v1889
    %v2454 = vunpack.c.l.b16 %v1890
    %v2455 = vunpack.c.h.b16 %v1890
    %v2456 = vunpack.c.l.b16 %v1891
    %v2457 = vunpack.c.h.b16 %v1891
    %v2458 = vunpack.c.l.b16 %v1892
    %v2459 = vunpack.c.h.b16 %v1892
    %v2460 = vunpack.c.l.b16 %v1893
    %v2461 = vunpack.c.h.b16 %v1893
    %v2462 = vunpack.c.l.b16 %v1894
    %v2463 = vunpack.c.h.b16 %v1894
    %v2464 = vunpack.c.l.b16 %v1895
    %v2465 = vunpack.c.h.b16 %v1895
    %v2466 = vunpack.c.l.b16 %v1896
    %v2467 = vunpack.c.h.b16 %v1896
    %v2468 = vunpack.c.l.b16 %v1897
    %v2469 = vunpack.c.h.b16 %v1897
    %v2470 = vunpack.c.l.b16 %v1898
    %v2471 = vunpack.c.h.b16 %v1898
    %v2472 = vunpack.c.l.b16 %v1899
    %v2473 = vunpack.c.h.b16 %v1899
    %v2474 = vunpack.c.l.b16 %v1900
    %v2475 = vunpack.c.h.b16 %v1900
    %v2476 = vunpack.c.l.b16 %v1901
    %v2477 = vunpack.c.h.b16 %v1901
    %v2478 = vpack.c.b16 %v2098, %v2094
    %v2479 = vpack.c.b16 %v2099, %v2095
    %v2480 = vpack.c.b16 %v2100, %v2096
    %v2481 = vpack.c.b16 %v2101, %v2097
    %v2482 = vpack.c.b16 %v2106, %v2102
    %v2483 = vpack.c.b16 %v2107, %v2103
    %v2484 = vpack.c.b16 %v2108, %v2104
    %v2485 = vpack.c.b16 %v2109, %v2105
    %v2486 = vpack.c.b16 %v2114, %v2110
    %v2487 = vpack.c.b16 %v2115, %v2111
    %v2488 = vpack.c.b16 %v2116, %v2112
    %v2489 = vpack.c.b16 %v2117, %v2113
    %v2490 = vpack.c.b16 %v2122, %v2118
    %v2491 = vpack.c.b16 %v2123, %v2119
    %v2492 = vpack.c.b16 %v2124, %v2120
    %v2493 = vpack.c.b16 %v2125, %v2121
    %v2494 = vpack.c.b16 %v2130, %v2126
    %v2495 = vpack.c.b16 %v2131, %v2127
    %v2496 = vpack.c.b16 %v2132, %v2128
    %v2497 = vpack.c.b16 %v2133, %v2129
    %v2498 = vpack.c.b16 %v2138, %v2134
    %v2499 = vpack.c.b16 %v2139, %v2135
    %v2500 = vpack.c.b16 %v2140, %v2136
    %v2501 = vpack.c.b16 %v2141, %v2137
    %v2502 = vpack.c.b16 %v2146, %v2142
    %v2503 = vpack.c.b16 %v2147, %v2143
    %v2504 = vpack.c.b16 %v2148, %v2144
    %v2505 = vpack.c.b16 %v2149, %v2145
    %v2506 = vpack.c.b16 %v2154, %v2150
    %v2507 = vpack.c.b16 %v2155, %v2151
    %v2508 = vpack.c.b16 %v2156, %v2152
    %v2509 = vpack.c.b16 %v2157, %v2153
    %v2510 = vpack.c.b16 %v2162, %v2158
    %v2511 = vpack.c.b16 %v2163, %v2159
    %v2512 = vpack.c.b16 %v2164, %v2160
    %v2513 = vpack.c.b16 %v2165, %v2161
    %v2514 = vpack.c.b16 %v2170, %v2166
    %v2515 = vpack.c.b16 %v2171, %v2167
    %v2516 = vpack.c.b16 %v2172, %v2168
    %v2517 = vpack.c.b16 %v2173, %v2169
    %v2518 = vpack.c.b16 %v2178, %v2174
    %v2519 = vpack.c.b16 %v2179, %v2175
    %v2520 = vpack.c.b16 %v2180, %v2176
    %v2521 = vpack.c.b16 %v2181, %v2177
    %v2522 = vpack.c.b16 %v2186, %v2182
    %v2523 = vpack.c.b16 %v2187, %v2183
    %v2524 = vpack.c.b16 %v2188, %v2184
    %v2525 = vpack.c.b16 %v2189, %v2185
    %v2526 = vpack.c.b16 %v2194, %v2190
    %v2527 = vpack.c.b16 %v2195, %v2191
    %v2528 = vpack.c.b16 %v2196, %v2192
    %v2529 = vpack.c.b16 %v2197, %v2193
    %v2530 = vpack.c.b16 %v2202, %v2198
    %v2531 = vpack.c.b16 %v2203, %v2199
    %v2532 = vpack.c.b16 %v2204, %v2200
    %v2533 = vpack.c.b16 %v2205, %v2201
    %v2534 = vpack.c.b16 %v2210, %v2206
    %v2535 = vpack.c.b16 %v2211, %v2207
    %v2536 = vpack.c.b16 %v2212, %v2208
    %v2537 = vpack.c.b16 %v2213, %v2209
    %v2538 = vpack.c.b16 %v2218, %v2214
    %v2539 = vpack.c.b16 %v2219, %v2215
    %v2540 = vpack.c.b16 %v2220, %v2216
    %v2541 = vpack.c.b16 %v2221, %v2217
    %v2542 = vpack.c.b16 %v2226, %v2222
    %v2543 = vpack.c.b16 %v2227, %v2223
    %v2544 = vpack.c.b16 %v2228, %v2224
    %v2545 = vpack.c.b16 %v2229, %v2225
    %v2546 = vpack.c.b16 %v2234, %v2230
    %v2547 = vpack.c.b16 %v2235, %v2231
    %v2548 = vpack.c.b16 %v2236, %v2232
    %v2549 = vpack.c.b16 %v2237, %v2233
    %v2550 = vpack.c.b16 %v2242, %v2238
    %v2551 = vpack.c.b16 %v2243, %v2239
    %v2552 = vpack.c.b16 %v2244, %v2240
    %v2553 = vpack.c.b16 %v2245, %v2241
    %v2554 = vpack.c.b16 %v2250, %v2246
    %v2555 = vpack.c.b16 %v2251, %v2247
    %v2556 = vpack.c.b16 %v2252, %v2248
    %v2557 = vpack.c.b16 %v2253, %v2249
    %v2558 = vpack.c.b16 %v2258, %v2254
    %v2559 = vpack.c.b16 %v2259, %v2255
    %v2560 = vpack.c.b16 %v2260, %v2256
    %v2561 = vpack.c.b16 %v2261, %v2257
    %v2562 = vpack.c.b16 %v2266, %v2262
    %v2563 = vpack.c.b16 %v2267, %v2263
    %v2564 = vpack.c.b16 %v2268, %v2264
    %v2565 = vpack.c.b16 %v2269, %v2265
    %v2566 = vpack.c.b16 %v2274, %v2270
    %v2567 = vpack.c.b16 %v2275, %v2271
    %v2568 = vpack.c.b16 %v2276, %v2272
    %v2569 = vpack.c.b16 %v2277, %v2273
    %v2570 = vpack.c.b16 %v2282, %v2278
    %v2571 = vpack.c.b16 %v2283, %v2279
    %v2572 = vpack.c.b16 %v2284, %v2280
    %v2573 = vpack.c.b16 %v2285, %v2281
    %v2574 = vpack.c.b16 %v2290, %v2286
    %v2575 = vpack.c.b16 %v2291, %v2287
    %v2576 = vpack.c.b16 %v2292, %v2288
    %v2577 = vpack.c.b16 %v2293, %v2289
    %v2578 = vpack.c.b16 %v2298, %v2294
    %v2579 = vpack.c.b16 %v2299, %v2295
    %v2580 = vpack.c.b16 %v2300, %v2296
    %v2581 = vpack.c.b16 %v2301, %v2297
    %v2582 = vpack.c.b16 %v2306, %v2302
    %v2583 = vpack.c.b16 %v2307, %v2303
    %v2584 = vpack.c.b16 %v2308, %v2304
    %v2585 = vpack.c.b16 %v2309, %v2305
    %v2586 = vpack.c.b16 %v2314, %v2310
    %v2587 = vpack.c.b16 %v2315, %v2311
    %v2588 = vpack.c.b16 %v2316, %v2312
    %v2589 = vpack.c.b16 %v2317, %v2313
    %v2590 = vpack.c.b16 %v2322, %v2318
    %v2591 = vpack.c.b16 %v2323, %v2319
    %v2592 = vpack.c.b16 %v2324, %v2320
    %v2593 = vpack.c.b16 %v2325, %v2321
    %v2594 = vpack.c.b16 %v2330, %v2326
    %v2595 = vpack.c.b16 %v2331, %v2327
    %v2596 = vpack.c.b16 %v2332, %v2328
    %v2597 = vpack.c.b16 %v2333, %v2329
    %v2598 = vpack.c.b16 %v2338, %v2334
    %v2599 = vpack.c.b16 %v2339, %v2335
    %v2600 = vpack.c.b16 %v2340, %v2336
    %v2601 = vpack.c.b16 %v2341, %v2337
    %v2602 = vpack.c.b16 %v2346, %v2342
    %v2603 = vpack.c.b16 %v2347, %v2343
    %v2604 = vpack.c.b16 %v2348, %v2344
    %v2605 = vpack.c.b16 %v2349, %v2345
    %v2606 = vpack.c.b16 %v2354, %v2350
    %v2607 = vpack.c.b16 %v2355, %v2351
    %v2608 = vpack.c.b16 %v2356, %v2352
    %v2609 = vpack.c.b16 %v2357, %v2353
    %v2610 = vpack.c.b16 %v2362, %v2358
    %v2611 = vpack.c.b16 %v2363, %v2359
    %v2612 = vpack.c.b16 %v2364, %v2360
    %v2613 = vpack.c.b16 %v2365, %v2361
    %v2614 = vpack.c.b16 %v2370, %v2366
    %v2615 = vpack.c.b16 %v2371, %v2367
    %v2616 = vpack.c.b16 %v2372, %v2368
    %v2617 = vpack.c.b16 %v2373, %v2369
    %v2618 = vpack.c.b16 %v2378, %v2374
    %v2619 = vpack.c.b16 %v2379, %v2375
    %v2620 = vpack.c.b16 %v2380, %v2376
    %v2621 = vpack.c.b16 %v2381, %v2377
    %v2622 = vpack.c.b16 %v2386, %v2382
    %v2623 = vpack.c.b16 %v2387, %v2383
    %v2624 = vpack.c.b16 %v2388, %v2384
    %v2625 = vpack.c.b16 %v2389, %v2385
    %v2626 = vpack.c.b16 %v2394, %v2390
    %v2627 = vpack.c.b16 %v2395, %v2391
    %v2628 = vpack.c.b16 %v2396, %v2392
    %v2629 = vpack.c.b16 %v2397, %v2393
    %v2630 = vpack.c.b16 %v2402, %v2398
    %v2631 = vpack.c.b16 %v2403, %v2399
    %v2632 = vpack.c.b16 %v2404, %v2400
    %v2633 = vpack.c.b16 %v2405, %v2401
    %v2634 = vpack.c.b16 %v2410, %v2406
    %v2635 = vpack.c.b16 %v2411, %v2407
    %v2636 = vpack.c.b16 %v2412, %v2408
    %v2637 = vpack.c.b16 %v2413, %v2409
    %v2638 = vpack.c.b16 %v2418, %v2414
    %v2639 = vpack.c.b16 %v2419, %v2415
    %v2640 = vpack.c.b16 %v2420, %v2416
    %v2641 = vpack.c.b16 %v2421, %v2417
    %v2642 = vpack.c.b16 %v2426, %v2422
    %v2643 = vpack.c.b16 %v2427, %v2423
    %v2644 = vpack.c.b16 %v2428, %v2424
    %v2645 = vpack.c.b16 %v2429, %v2425
    %v2646 = vpack.c.b16 %v2434, %v2430
    %v2647 = vpack.c.b16 %v2435, %v2431
    %v2648 = vpack.c.b16 %v2436, %v2432
    %v2649 = vpack.c.b16 %v2437, %v2433
    %v2650 = vpack.c.b16 %v2442, %v2438
    %v2651 = vpack.c.b16 %v2443, %v2439
    %v2652 = vpack.c.b16 %v2444, %v2440
    %v2653 = vpack.c.b16 %v2445, %v2441
    %v2654 = vpack.c.b16 %v2450, %v2446
    %v2655 = vpack.c.b16 %v2451, %v2447
    %v2656 = vpack.c.b16 %v2452, %v2448
    %v2657 = vpack.c.b16 %v2453, %v2449
    %v2658 = vpack.c.b16 %v2458, %v2454
    %v2659 = vpack.c.b16 %v2459, %v2455
    %v2660 = vpack.c.b16 %v2460, %v2456
    %v2661 = vpack.c.b16 %v2461, %v2457
    %v2662 = vpack.c.b16 %v2466, %v2462
    %v2663 = vpack.c.b16 %v2467, %v2463
    %v2664 = vpack.c.b16 %v2468, %v2464
    %v2665 = vpack.c.b16 %v2469, %v2465
    %v2666 = vpack.c.b16 %v2474, %v2470
    %v2667 = vpack.c.b16 %v2475, %v2471
    %v2668 = vpack.c.b16 %v2476, %v2472
    %v2669 = vpack.c.b16 %v2477, %v2473
    %2862 = vmatprep.subr.bf16.mxu0 %v2507
    %2863 = vmatpush1.bf16.msra.mxu0 %v2506
    %2864 = vmatprep.subr.bf16.mxu0 %v2503
    %2865 = vmatpush1.bf16.msra.mxu0 %v2502
    %2866 = vmatprep.subr.bf16.mxu0 %v2499
    %2867 = vmatpush1.bf16.msra.mxu0 %v2498
    %2868 = vmatprep.subr.bf16.mxu0 %v2495
    %2869 = vmatpush1.bf16.msra.mxu0 %v2494
    %2870 = vmatprep.subr.bf16.mxu0 %v2491
    %2871 = vmatpush1.bf16.msra.mxu0 %v2490
    %2872 = vmatprep.subr.bf16.mxu0 %v2487
    %2873 = vmatpush1.bf16.msra.mxu0 %v2486
    %2874 = vmatprep.subr.bf16.mxu0 %v2483
    %2875 = vmatpush1.bf16.msra.mxu0 %v2482
    %2876 = vmatprep.subr.bf16.mxu0 %v2479
    %2877 = vmatpush1.bf16.msra.mxu0 %v2478
    %2878 = vmatprep.subr.bf16.mxu0 %v2539
    %2879 = vmatpush2.bf16.msra.mxu0 %v2538
    %2880 = vmatprep.subr.bf16.mxu0 %v2535
    %2881 = vmatpush2.bf16.msra.mxu0 %v2534
    %2882 = vmatprep.subr.bf16.mxu0 %v2531
    %2883 = vmatpush2.bf16.msra.mxu0 %v2530
    %2884 = vmatprep.subr.bf16.mxu0 %v2527
    %2885 = vmatpush2.bf16.msra.mxu0 %v2526
    %2886 = vmatprep.subr.bf16.mxu0 %v2523
    %2887 = vmatpush2.bf16.msra.mxu0 %v2522
    %2888 = vmatprep.subr.bf16.mxu0 %v2519
    %2889 = vmatpush2.bf16.msra.mxu0 %v2518
    %2890 = vmatprep.subr.bf16.mxu0 %v2515
    %2891 = vmatpush2.bf16.msra.mxu0 %v2514
    %2892 = vmatprep.subr.bf16.mxu0 %v2511
    %2893 = vmatpush2.bf16.msra.mxu0 %v2510
    %2894 = vmatprep.mubr.bf16.mxu0 %v1699
    %2895 = vmatmul.mubr.bf16.gmra.mxu0 %v1698
    %v2896 = vpop.f32.mrf.mxu0
    %v2897 = vadd.f32 0.0, %v2896
    %v2898 = vpop.f32.mrf.mxu0
    %v2899 = vadd.f32 0.0, %v2898
    %v2900 = vpop.f32.mrf.mxu0
    %v2901 = vadd.f32 0.0, %v2900
    %v2902 = vpop.f32.mrf.mxu0
    %v2903 = vadd.f32 0.0, %v2902
    %2904 = vmatprep.mubr.bf16.mxu0 %v1705
    %2905 = vmatmul.mubr.bf16.gmra.mxu0 %v1704
    %v2906 = vpop.f32.mrf.mxu0
    %v2907 = vadd.f32 0.0, %v2906
    %v2908 = vpop.f32.mrf.mxu0
    %v2909 = vadd.f32 0.0, %v2908
    %v2910 = vpop.f32.mrf.mxu0
    %v2911 = vpop.f32.mrf.mxu0
    %2912 = vdwg.mxu0
    %2913 = vmatprep.subr.bf16.mxu0 %v2571
    %2914 = vmatpush1.bf16.msra.mxu0 %v2570
    %2915 = vmatprep.subr.bf16.mxu0 %v2567
    %2916 = vmatpush1.bf16.msra.mxu0 %v2566
    %2917 = vmatprep.subr.bf16.mxu0 %v2563
    %2918 = vmatpush1.bf16.msra.mxu0 %v2562
    %2919 = vmatprep.subr.bf16.mxu0 %v2559
    %2920 = vmatpush1.bf16.msra.mxu0 %v2558
    %2921 = vmatprep.subr.bf16.mxu0 %v2555
    %2922 = vmatpush1.bf16.msra.mxu0 %v2554
    %2923 = vmatprep.subr.bf16.mxu0 %v2551
    %2924 = vmatpush1.bf16.msra.mxu0 %v2550
    %2925 = vmatprep.subr.bf16.mxu0 %v2547
    %2926 = vmatpush1.bf16.msra.mxu0 %v2546
    %2927 = vmatprep.subr.bf16.mxu0 %v2543
    %2928 = vmatpush1.bf16.msra.mxu0 %v2542
    %2929 = vmatprep.subr.bf16.mxu0 %v2603
    %2930 = vmatpush2.bf16.msra.mxu0 %v2602
    %2931 = vmatprep.subr.bf16.mxu0 %v2599
    %2932 = vmatpush2.bf16.msra.mxu0 %v2598
    %2933 = vmatprep.subr.bf16.mxu0 %v2595
    %2934 = vmatpush2.bf16.msra.mxu0 %v2594
    %2935 = vmatprep.subr.bf16.mxu0 %v2591
    %2936 = vmatpush2.bf16.msra.mxu0 %v2590
    %2937 = vmatprep.subr.bf16.mxu0 %v2587
    %2938 = vmatpush2.bf16.msra.mxu0 %v2586
    %2939 = vmatprep.subr.bf16.mxu0 %v2583
    %2940 = vmatpush2.bf16.msra.mxu0 %v2582
    %2941 = vmatprep.subr.bf16.mxu0 %v2579
    %2942 = vmatpush2.bf16.msra.mxu0 %v2578
    %2943 = vmatprep.subr.bf16.mxu0 %v2575
    %2944 = vmatpush2.bf16.msra.mxu0 %v2574
    %2945 = vmatprep.mubr.bf16.mxu0 %v1701
    %2946 = vmatmul.mubr.bf16.gmra.mxu0 %v1700
    %v2947 = vpop.f32.mrf.mxu0
    %v2948 = vadd.f32 %v2897, %v2947
    %v2949 = vpop.f32.mrf.mxu0
    %v2950 = vadd.f32 %v2899, %v2949
    %v2951 = vpop.f32.mrf.mxu0
    %v2952 = vadd.f32 %v2901, %v2951
    %v2953 = vpop.f32.mrf.mxu0
    %v2954 = vadd.f32 %v2903, %v2953
    %2955 = vmatprep.mubr.bf16.mxu0 %v1707
    %2956 = vmatmul.mubr.bf16.gmra.mxu0 %v1706
    %v2957 = vpop.f32.mrf.mxu0
    %v2958 = vadd.f32 %v2907, %v2957
    %v2959 = vpop.f32.mrf.mxu0
    %v2960 = vadd.f32 %v2909, %v2959
    %v2961 = vpop.f32.mrf.mxu0
    %v2962 = vpop.f32.mrf.mxu0
    %2963 = vdwg.mxu0
    %2964 = vmatprep.subr.bf16.mxu0 %v2635
    %2965 = vmatpush1.bf16.msra.mxu0 %v2634
    %2966 = vmatprep.subr.bf16.mxu0 %v2631
    %2967 = vmatpush1.bf16.msra.mxu0 %v2630
    %2968 = vmatprep.subr.bf16.mxu0 %v2627
    %2969 = vmatpush1.bf16.msra.mxu0 %v2626
    %2970 = vmatprep.subr.bf16.mxu0 %v2623
    %2971 = vmatpush1.bf16.msra.mxu0 %v2622
    %2972 = vmatprep.subr.bf16.mxu0 %v2619
    %2973 = vmatpush1.bf16.msra.mxu0 %v2618
    %2974 = vmatprep.subr.bf16.mxu0 %v2615
    %2975 = vmatpush1.bf16.msra.mxu0 %v2614
    %2976 = vmatprep.subr.bf16.mxu0 %v2611
    %2977 = vmatpush1.bf16.msra.mxu0 %v2610
    %2978 = vmatprep.subr.bf16.mxu0 %v2607
    %2979 = vmatpush1.bf16.msra.mxu0 %v2606
    %2980 = vmatprep.subr.bf16.mxu0 %v2667
    %2981 = vmatpush2.bf16.msra.mxu0 %v2666
    %2982 = vmatprep.subr.bf16.mxu0 %v2663
    %2983 = vmatpush2.bf16.msra.mxu0 %v2662
    %2984 = vmatprep.subr.bf16.mxu0 %v2659
    %2985 = vmatpush2.bf16.msra.mxu0 %v2658
    %2986 = vmatprep.subr.bf16.mxu0 %v2655
    %2987 = vmatpush2.bf16.msra.mxu0 %v2654
    %2988 = vmatprep.subr.bf16.mxu0 %v2651
    %2989 = vmatpush2.bf16.msra.mxu0 %v2650
    %2990 = vmatprep.subr.bf16.mxu0 %v2647
    %2991 = vmatpush2.bf16.msra.mxu0 %v2646
    %2992 = vmatprep.subr.bf16.mxu0 %v2643
    %2993 = vmatpush2.bf16.msra.mxu0 %v2642
    %2994 = vmatprep.subr.bf16.mxu0 %v2639
    %2995 = vmatpush2.bf16.msra.mxu0 %v2638
    %2996 = vmatprep.mubr.bf16.mxu0 %v1703
    %2997 = vmatmul.mubr.bf16.gmra.mxu0 %v1702
    %v2998 = vpop.f32.mrf.mxu0
    %v2999 = vadd.f32 %v2948, %v2998
    %v3000 = vpop.f32.mrf.mxu0
    %v3001 = vadd.f32 %v2950, %v3000
    %v3002 = vpop.f32.mrf.mxu0
    %v3003 = vadd.f32 %v2952, %v3002
    %v3004 = vpop.f32.mrf.mxu0
    %v3005 = vadd.f32 %v2954, %v3004
    %3006 = vmatprep.mubr.bf16.mxu0 %v1709
    %3007 = vmatmul.mubr.bf16.gmra.mxu0 %v1708
    %v3008 = vpop.f32.mrf.mxu0
    %v3009 = vadd.f32 %v2958, %v3008
    %v3010 = vpop.f32.mrf.mxu0
    %v3011 = vadd.f32 %v2960, %v3010
    %v3012 = vpop.f32.mrf.mxu0
    %v3013 = vpop.f32.mrf.mxu0
    %3014 = vdwg.mxu0
    %3015 = vmatprep.subr.bf16.mxu0 %v2509
    %3016 = vmatpush1.bf16.msra.mxu0 %v2508
    %3017 = vmatprep.subr.bf16.mxu0 %v2505
    %3018 = vmatpush1.bf16.msra.mxu0 %v2504
    %3019 = vmatprep.subr.bf16.mxu0 %v2501
    %3020 = vmatpush1.bf16.msra.mxu0 %v2500
    %3021 = vmatprep.subr.bf16.mxu0 %v2497
    %3022 = vmatpush1.bf16.msra.mxu0 %v2496
    %3023 = vmatprep.subr.bf16.mxu0 %v2493
    %3024 = vmatpush1.bf16.msra.mxu0 %v2492
    %3025 = vmatprep.subr.bf16.mxu0 %v2489
    %3026 = vmatpush1.bf16.msra.mxu0 %v2488
    %3027 = vmatprep.subr.bf16.mxu0 %v2485
    %3028 = vmatpush1.bf16.msra.mxu0 %v2484
    %3029 = vmatprep.subr.bf16.mxu0 %v2481
    %3030 = vmatpush1.bf16.msra.mxu0 %v2480
    %3031 = vmatprep.subr.bf16.mxu0 %v2541
    %3032 = vmatpush2.bf16.msra.mxu0 %v2540
    %3033 = vmatprep.subr.bf16.mxu0 %v2537
    %3034 = vmatpush2.bf16.msra.mxu0 %v2536
    %3035 = vmatprep.subr.bf16.mxu0 %v2533
    %3036 = vmatpush2.bf16.msra.mxu0 %v2532
    %3037 = vmatprep.subr.bf16.mxu0 %v2529
    %3038 = vmatpush2.bf16.msra.mxu0 %v2528
    %3039 = vmatprep.subr.bf16.mxu0 %v2525
    %3040 = vmatpush2.bf16.msra.mxu0 %v2524
    %3041 = vmatprep.subr.bf16.mxu0 %v2521
    %3042 = vmatpush2.bf16.msra.mxu0 %v2520
    %3043 = vmatprep.subr.bf16.mxu0 %v2517
    %3044 = vmatpush2.bf16.msra.mxu0 %v2516
    %3045 = vmatprep.subr.bf16.mxu0 %v2513
    %3046 = vmatpush2.bf16.msra.mxu0 %v2512
    %3047 = vmatprep.mubr.bf16.mxu0 %v1699
    %3048 = vmatmul.mubr.bf16.gmra.mxu0 %v1698
    %v3049 = vpop.f32.mrf.mxu0
    %v3050 = vadd.f32 0.0, %v3049
    %v3051 = vpop.f32.mrf.mxu0
    %v3052 = vadd.f32 0.0, %v3051
    %v3053 = vpop.f32.mrf.mxu0
    %v3054 = vadd.f32 0.0, %v3053
    %v3055 = vpop.f32.mrf.mxu0
    %v3056 = vadd.f32 0.0, %v3055
    %3057 = vmatprep.mubr.bf16.mxu0 %v1705
    %3058 = vmatmul.mubr.bf16.gmra.mxu0 %v1704
    %v3059 = vpop.f32.mrf.mxu0
    %v3060 = vadd.f32 0.0, %v3059
    %v3061 = vpop.f32.mrf.mxu0
    %v3062 = vadd.f32 0.0, %v3061
    %v3063 = vpop.f32.mrf.mxu0
    %v3064 = vpop.f32.mrf.mxu0
    %3065 = vdwg.mxu0
    %3066 = vmatprep.subr.bf16.mxu0 %v2573
    %3067 = vmatpush1.bf16.msra.mxu0 %v2572
    %3068 = vmatprep.subr.bf16.mxu0 %v2569
    %3069 = vmatpush1.bf16.msra.mxu0 %v2568
    %3070 = vmatprep.subr.bf16.mxu0 %v2565
    %3071 = vmatpush1.bf16.msra.mxu0 %v2564
    %3072 = vmatprep.subr.bf16.mxu0 %v2561
    %3073 = vmatpush1.bf16.msra.mxu0 %v2560
    %3074 = vmatprep.subr.bf16.mxu0 %v2557
    %3075 = vmatpush1.bf16.msra.mxu0 %v2556
    %3076 = vmatprep.subr.bf16.mxu0 %v2553
    %3077 = vmatpush1.bf16.msra.mxu0 %v2552
    %3078 = vmatprep.subr.bf16.mxu0 %v2549
    %3079 = vmatpush1.bf16.msra.mxu0 %v2548
    %3080 = vmatprep.subr.bf16.mxu0 %v2545
    %3081 = vmatpush1.bf16.msra.mxu0 %v2544
    %3082 = vmatprep.subr.bf16.mxu0 %v2605
    %3083 = vmatpush2.bf16.msra.mxu0 %v2604
    %3084 = vmatprep.subr.bf16.mxu0 %v2601
    %3085 = vmatpush2.bf16.msra.mxu0 %v2600
    %3086 = vmatprep.subr.bf16.mxu0 %v2597
    %3087 = vmatpush2.bf16.msra.mxu0 %v2596
    %3088 = vmatprep.subr.bf16.mxu0 %v2593
    %3089 = vmatpush2.bf16.msra.mxu0 %v2592
    %3090 = vmatprep.subr.bf16.mxu0 %v2589
    %3091 = vmatpush2.bf16.msra.mxu0 %v2588
    %3092 = vmatprep.subr.bf16.mxu0 %v2585
    %3093 = vmatpush2.bf16.msra.mxu0 %v2584
    %3094 = vmatprep.subr.bf16.mxu0 %v2581
    %3095 = vmatpush2.bf16.msra.mxu0 %v2580
    %3096 = vmatprep.subr.bf16.mxu0 %v2577
    %3097 = vmatpush2.bf16.msra.mxu0 %v2576
    %3098 = vmatprep.mubr.bf16.mxu0 %v1701
    %3099 = vmatmul.mubr.bf16.gmra.mxu0 %v1700
    %v3100 = vpop.f32.mrf.mxu0
    %v3101 = vadd.f32 %v3050, %v3100
    %v3102 = vpop.f32.mrf.mxu0
    %v3103 = vadd.f32 %v3052, %v3102
    %v3104 = vpop.f32.mrf.mxu0
    %v3105 = vadd.f32 %v3054, %v3104
    %v3106 = vpop.f32.mrf.mxu0
    %v3107 = vadd.f32 %v3056, %v3106
    %3108 = vmatprep.mubr.bf16.mxu0 %v1707
    %3109 = vmatmul.mubr.bf16.gmra.mxu0 %v1706
    %v3110 = vpop.f32.mrf.mxu0
    %v3111 = vadd.f32 %v3060, %v3110
    %v3112 = vpop.f32.mrf.mxu0
    %v3113 = vadd.f32 %v3062, %v3112
    %v3114 = vpop.f32.mrf.mxu0
    %v3115 = vpop.f32.mrf.mxu0
    %3116 = vdwg.mxu0
    %3117 = vmatprep.subr.bf16.mxu0 %v2637
    %3118 = vmatpush1.bf16.msra.mxu0 %v2636
    %3119 = vmatprep.subr.bf16.mxu0 %v2633
    %3120 = vmatpush1.bf16.msra.mxu0 %v2632
    %3121 = vmatprep.subr.bf16.mxu0 %v2629
    %3122 = vmatpush1.bf16.msra.mxu0 %v2628
    %3123 = vmatprep.subr.bf16.mxu0 %v2625
    %3124 = vmatpush1.bf16.msra.mxu0 %v2624
    %3125 = vmatprep.subr.bf16.mxu0 %v2621
    %3126 = vmatpush1.bf16.msra.mxu0 %v2620
    %3127 = vmatprep.subr.bf16.mxu0 %v2617
    %3128 = vmatpush1.bf16.msra.mxu0 %v2616
    %3129 = vmatprep.subr.bf16.mxu0 %v2613
    %3130 = vmatpush1.bf16.msra.mxu0 %v2612
    %3131 = vmatprep.subr.bf16.mxu0 %v2609
    %3132 = vmatpush1.bf16.msra.mxu0 %v2608
    %3133 = vmatprep.subr.bf16.mxu0 %v2669
    %3134 = vmatpush2.bf16.msra.mxu0 %v2668
    %3135 = vmatprep.subr.bf16.mxu0 %v2665
    %3136 = vmatpush2.bf16.msra.mxu0 %v2664
    %3137 = vmatprep.subr.bf16.mxu0 %v2661
    %3138 = vmatpush2.bf16.msra.mxu0 %v2660
    %3139 = vmatprep.subr.bf16.mxu0 %v2657
    %3140 = vmatpush2.bf16.msra.mxu0 %v2656
    %3141 = vmatprep.subr.bf16.mxu0 %v2653
    %3142 = vmatpush2.bf16.msra.mxu0 %v2652
    %3143 = vmatprep.subr.bf16.mxu0 %v2649
    %3144 = vmatpush2.bf16.msra.mxu0 %v2648
    %3145 = vmatprep.subr.bf16.mxu0 %v2645
    %3146 = vmatpush2.bf16.msra.mxu0 %v2644
    %3147 = vmatprep.subr.bf16.mxu0 %v2641
    %3148 = vmatpush2.bf16.msra.mxu0 %v2640
    %3149 = vmatprep.mubr.bf16.mxu0 %v1703
    %3150 = vmatmul.mubr.bf16.gmra.mxu0 %v1702
    %v3151 = vpop.f32.mrf.mxu0
    %v3152 = vadd.f32 %v3101, %v3151
    %v3153 = vpop.f32.mrf.mxu0
    %v3154 = vadd.f32 %v3103, %v3153
    %v3155 = vpop.f32.mrf.mxu0
    %v3156 = vadd.f32 %v3105, %v3155
    %v3157 = vpop.f32.mrf.mxu0
    %v3158 = vadd.f32 %v3107, %v3157
    %3159 = vmatprep.mubr.bf16.mxu0 %v1709
    %3160 = vmatmul.mubr.bf16.gmra.mxu0 %v1708
    %v3161 = vpop.f32.mrf.mxu0
    %v3162 = vadd.f32 %v3111, %v3161
    %v3163 = vpop.f32.mrf.mxu0
    %v3164 = vadd.f32 %v3113, %v3163
    %v3165 = vpop.f32.mrf.mxu0
    %v3166 = vpop.f32.mrf.mxu0
    %3167 = vdwg.mxu0
    %v3168 = vsel %vm100, %v3003, 0.0
    %v3171 = vrot.slane %v3001, 7
    %v3172 = vrot.slane %v3005, 7
    %v3173 = vsel %vm100, %v3171, %v3172
    %v3176 = vsel %vm100, 0.0, %v3171
    %vm3177 = vcmask 1041408
    %v3178 = vsel %vm3177, %v3173, 0.0
    %v3179 = vadd.f32 %v2999, %v3176
    %v3180 = vadd.f32 %v3168, %v3178
    %v3183 = vrot.slane %v3152, 6
    %v3184 = vrot.slane %v3156, 6
    %v3185 = vsel %vm3177, %v3183, %v3184
    %v3188 = vsel %vm3177, 0.0, %v3183
    %vm3189 = vcmask 1042432
    %v3190 = vsel %vm3189, %v3185, 0.0
    %v3191 = vadd.f32 %v3179, %v3188
    %v3192 = vadd.f32 %v3180, %v3190
    %v3195 = vrot.slane %v3154, 5
    %v3196 = vrot.slane %v3158, 5
    %v3197 = vsel %vm3189, %v3195, %v3196
    %v3200 = vsel %vm3189, 0.0, %v3195
    %v3201 = vadd.f32 %v3191, %v3200
    %v3202 = vadd.f32 %v3192, %v3197
    %vm3205 = vcmask 1046528
    %v3206 = vrot.slane %v3003, 1
    %v3207 = vrot.slane %v3009, 1
    %v3208 = vsel %vm3205, %v3206, %v3207
    %v3211 = vsel %vm100, %v3207, 0.0
    %v3212 = vsel %vm100, 0.0, %v3005
    %v3213 = vsel %vm3177, %v3011, 0.0
    %v3214 = vadd.f32 %v3208, %v3212
    %v3215 = vadd.f32 %v3211, %v3213
    %v3217 = vrot.slane %v3156, 7
    %v3218 = vrot.slane %v3162, 7
    %v3219 = vsel %vm100, %v3217, %v3218
    %v3222 = vsel %vm3177, 0.0, %v3217
    %v3223 = vsel %vm3189, %v3219, 0.0
    %v3224 = vadd.f32 %v3214, %v3222
    %v3225 = vadd.f32 %v3215, %v3223
    %v3227 = vrot.slane %v3158, 6
    %v3228 = vrot.slane %v3164, 6
    %v3229 = vsel %vm3177, %v3227, %v3228
    %v3232 = vsel %vm3189, 0.0, %v3227
    %v3233 = vadd.f32 %v3224, %v3232
    %v3234 = vadd.f32 %v3225, %v3229
    %vm3237 = vcmask 1043456
    %v3238 = vrot.slane %v3233, 4
    %v3239 = vrot.slane %v3234, 4
    %v3240 = vsel %vm3237, %v3238, %v3239
    %v3243 = vsel %vm3237, %v3202, %v3238
    %v3244 = vld [vmem:[#allocation8] sm:$0xff]
    %v3245 = vld [vmem:[#allocation8 + $0x8] sm:$0xff]
    %v3246 = vld [vmem:[#allocation8 + $0x10] sm:$0xff]
    %v3247 = vmul.f32 %v3201, %v3244
    %v3248 = vmul.f32 %v3243, %v3245
    %v3249 = vmul.f32 %v3240, %v3246
    %3250 = vst [vmem:[#allocation10] sm:$0xff] %v3247
    %3251 = vst [vmem:[#allocation10 + $0x8] sm:$0xff] %v3248
    %3252 = vst [vmem:[#allocation10 + $0x10] sm:$0xff] %v3249
    // Predicated region
    $region38: #{tpu_custom_call.1} parent=1 // pred_check
      _
    $region39: #{tpu_custom_call.1} parent=1 // pred_check_branch
      %3254 = sbr.rel (0) target = $region41
    $region40: #{tpu_custom_call.1} parent=1 // pred_region
      %s3256 = ssub.s32 384, 384
      %3257 = vsyncadd [#allocation4], %s3256
      %s3258 = sshll.u32 [#allocation10], 4
      %s3259 = int_to_ptr.vmem [resolvable:$true] %s3258
      %3264 = dma.vmem_to_hbm [thread:$0]  %s3259, 384, %s5, [#allocation4], 128, 128, 8
    $region41: #{tpu_custom_call.1} parent=1 // pred_fallthru
      _
    // Predicated region
    $region42: #{tpu_custom_call.1} parent=1 // pred_check
      _
    $region43: #{tpu_custom_call.1} parent=1 // pred_check_branch
      %3266 = sbr.rel (0) target = $region45
    $region44: #{tpu_custom_call.1} parent=1 // pred_region
      %3267 = dma.done [#allocation4], 384
    $region45: #{tpu_custom_call.1} parent=1 // pred_fallthru
      _
    %3268 = vsyncpa [#allocation3], 1
    %3269 = vsyncpa [#allocation6], 1
    %3270 = vsyncpa [#allocation9], 1
    %3271 = vsyncpa [#allocation4], 1

</llo_original>
